<compile_context>
chip_gen: v7x
topology: tpu7x:2x2x1
jax: 0.10.0
libtpu: 0.0.40
codegen_flags: <defaults>
</compile_context>

<pallas_src>
import numpy as np
import jax
import jax.numpy as jnp
from jax.experimental import pallas as pl
from jax.experimental.pallas import tpu as pltpu

GATE_PAD = 128      # lane width of each packed gate block
NUM_GATES = 4       # ff1, ff2, time_a, time_b


# ----------------------------------------------------------------------------
# Fused Pallas kernel: whole wired CfC step (all layers) in one call
# ----------------------------------------------------------------------------
def _make_fused_kernel(layer_sizes, offsets, motor_size):
    n_layers = len(layer_sizes)

    def kernel(*refs):
        x_ref, hx_ref, ts_ref = refs[0], refs[1], refs[2]
        w_refs = refs[3:3 + 3 * n_layers]
        new_hx_ref = refs[3 + 3 * n_layers]
        motor_ref = refs[4 + 3 * n_layers]

        hx = hx_ref[...]                                   # (B, units) old state
        ts = ts_ref[...]                                   # (B, 1)
        B = ts.shape[0]
        ts_b = jnp.broadcast_to(ts, (B, GATE_PAD))         # hoisted once, reused
        current = x_ref[...]                               # (B, input_dim)

        for l in range(n_layers):
            H = layer_sizes[l]
            off = offsets[l]
            wx = w_refs[3 * l][...]                        # (P_pad, 4*128)
            wh = w_refs[3 * l + 1][...]                    # (units, 4*128), zero rows outside layer l
            b = w_refs[3 * l + 2][...]                     # (1, 4*128)

            # One lane-dense MXU pass per operand covering all four gates.
            z = (jnp.dot(current, wx, preferred_element_type=jnp.float32)
                 + jnp.dot(hx, wh, preferred_element_type=jnp.float32)
                 + b)                                      # (B, 4*128)

            ff1 = jnp.tanh(z[:, 0 * GATE_PAD:1 * GATE_PAD])
            ff2 = jnp.tanh(z[:, 1 * GATE_PAD:2 * GATE_PAD])
            t_a = z[:, 2 * GATE_PAD:3 * GATE_PAD]
            t_b = z[:, 3 * GATE_PAD:4 * GATE_PAD]
            t_interp = jax.nn.sigmoid(t_a * ts_b + t_b)
            new_h = ff1 * (1.0 - t_interp) + t_interp * ff2   # (B, 128); lanes >= H are exactly 0

            new_hx_ref[:, off:off + H] = new_h[:, :H].astype(new_hx_ref.dtype)
            if l == n_layers - 1:
                motor_ref[...] = new_h[:, :motor_size].astype(motor_ref.dtype)

            # Padded block feeds the next layer; its Wx has zero rows beyond H,
            # so the zero padded lanes contribute nothing.
            current = new_h

    return kernel


def efficient_wired_cfc_forward(x, hx, packed_params, wiring, timespans=None):
    """Single forward step of the wired CfC cell via one fused Pallas call."""
    B = x.shape[0]
    dtype = x.dtype
    if timespans is None:
        ts = jnp.ones((B, 1), dtype)       # torch.full((B,), 1.0), viewed as (B, 1)
    else:
        ts = jnp.reshape(timespans, (B, 1)).astype(dtype)

    layer_sizes = list(wiring["layer_sizes"])
    units = wiring["units"]
    offsets = [int(o) for o in np.cumsum([0] + layer_sizes)[:-1]]
    out_idx = list(wiring["output_neuron_indices"])
    last_layer = list(range(units - layer_sizes[-1], units))
    motor_size = layer_sizes[-1]

    kernel = _make_fused_kernel(tuple(layer_sizes), tuple(offsets), motor_size)

    args = [x, hx, ts]
    for p in packed_params:
        args.extend([p["wx"], p["wh"], p["b"]])

    vmem = pl.BlockSpec(memory_space=pltpu.MemorySpace.VMEM)
    new_hx, last_h = pl.pallas_call(
        kernel,
        out_shape=(jax.ShapeDtypeStruct((B, units), dtype),
                   jax.ShapeDtypeStruct((B, motor_size), dtype)),
        in_specs=[vmem] * len(args),
        out_specs=(vmem, vmem),
    )(*args)

    if out_idx == last_layer:
        # NCP-style wiring: motor neurons are exactly the last layer -> direct kernel output.
        output = last_h
    else:
        # Generic fallback matching torch index_select semantics.
        output = new_hx[:, np.asarray(out_idx, dtype=np.int32)]
    return output, new_hx


# ----------------------------------------------------------------------------
# Deterministic synthetic wiring (NCP-like: inter -> command -> motor)
# ----------------------------------------------------------------------------
def build_wiring(input_dim=6, layer_sizes=(10, 8, 4), seed=0):
    rng = np.random.default_rng(seed)
    units = int(sum(layer_sizes))
    neuron_indices = []
    start = 0
    for ls in layer_sizes:
        neuron_indices.append(list(range(start, start + ls)))
        start += ls

    def sparse_pm1(rows, cols, density=0.6):
        vals = rng.choice([-1.0, 0.0, 1.0], size=(rows, cols),
                          p=[density / 2, 1.0 - density, density / 2])
        for c in range(cols):
            if np.all(vals[:, c] == 0.0):
                vals[rng.integers(0, rows), c] = 1.0
        return vals

    sensory_adj = np.zeros((input_dim, units), dtype=np.float32)
    sensory_adj[:, neuron_indices[0]] = sparse_pm1(input_dim, layer_sizes[0])

    adjacency = np.zeros((units, units), dtype=np.float32)
    for l in range(1, len(layer_sizes)):
        prev = neuron_indices[l - 1]
        cur = neuron_indices[l]
        adjacency[np.ix_(prev, cur)] = sparse_pm1(len(prev), len(cur))

    return {
        "input_dim": input_dim,
        "units": units,
        "layer_sizes": list(layer_sizes),
        "neuron_indices": neuron_indices,
        "sensory_adjacency_matrix": sensory_adj,
        "adjacency_matrix": adjacency,
        "output_neuron_indices": list(neuron_indices[-1]),  # motor = last layer
    }


# ----------------------------------------------------------------------------
# Deterministic parameter init (masks folded in) + lane-dense packing
# ----------------------------------------------------------------------------
def init_params(wiring, key, dtype=jnp.float32):
    """Unpacked masked weights: per layer, w* is ((fan_in + H), H), b* is (1, H)."""
    params = []
    in_features = wiring["input_dim"]
    for l, H in enumerate(wiring["layer_sizes"]):
        idx = wiring["neuron_indices"][l]
        if l == 0:
            input_adj = wiring["sensory_adjacency_matrix"][:, idx]
        else:
            prev = wiring["neuron_indices"][l - 1]
            input_adj = wiring["adjacency_matrix"][np.ix_(prev, idx)]
        # Recurrent block fully connected (ones), matching EfficientWiredCfCCell.
        mask = np.abs(np.concatenate(
            [input_adj, np.ones((H, H), dtype=np.float32)], axis=0)).astype(np.float32)
        F = in_features + H
        key, *ks = jax.random.split(key, 9)
        scale = 1.0 / np.sqrt(F)
        mask_j = jnp.asarray(mask, dtype)
        p = {
            "w1": jax.random.normal(ks[0], (F, H), dtype) * scale * mask_j,
            "b1": jax.random.normal(ks[1], (1, H), dtype) * 0.1,
            "w2": jax.random.normal(ks[2], (F, H), dtype) * scale * mask_j,
            "b2": jax.random.normal(ks[3], (1, H), dtype) * 0.1,
            "wa": jax.random.normal(ks[4], (F, H), dtype) * scale * mask_j,
            "ba": jax.random.normal(ks[5], (1, H), dtype) * 0.1,
            "wb": jax.random.normal(ks[6], (F, H), dtype) * scale * mask_j,
            "bb": jax.random.normal(ks[7], (1, H), dtype) * 0.1,
        }
        params.append(p)
        in_features = H
    return params


def pack_params(params, wiring, dtype=jnp.float32):
    """Pack per-layer gate weights into lane-dense (rows, 4*128) matrices.

    wx: rows = fan_in (layer 0) or 128 (zero-padded beyond the previous layer's H)
    wh: rows = units, zero outside this layer's neuron range (folds layer selection)
    b : (1, 4*128)
    """
    # TODO(synk): bf16 weight cast (v6e/v7x MXU win) skipped to keep f32 parity with reference.
    layer_sizes = wiring["layer_sizes"]
    units = wiring["units"]
    offsets = np.cumsum([0] + layer_sizes)
    input_dim = wiring["input_dim"]
    gate_keys = [("w1", "b1"), ("w2", "b2"), ("wa", "ba"), ("wb", "bb")]
    packed = []
    for l, H in enumerate(layer_sizes):
        p = params[l]
        P = input_dim if l == 0 else layer_sizes[l - 1]
        in_rows = input_dim if l == 0 else GATE_PAD   # chained layers take padded (B, 128) blocks
        wx = np.zeros((in_rows, NUM_GATES * GATE_PAD), np.float32)
        wh = np.zeros((units, NUM_GATES * GATE_PAD), np.float32)
        b = np.zeros((1, NUM_GATES * GATE_PAD), np.float32)
        for g, (wk, bk) in enumerate(gate_keys):
            w = np.asarray(p[wk])                     # (P + H, H)
            wx[:P, g * GATE_PAD:g * GATE_PAD + H] = w[:P, :]
            wh[offsets[l]:offsets[l] + H, g * GATE_PAD:g * GATE_PAD + H] = w[P:, :]
            b[0, g * GATE_PAD:g * GATE_PAD + H] = np.asarray(p[bk])[0]
        packed.append({"wx": jnp.asarray(wx, dtype),
                       "wh": jnp.asarray(wh, dtype),
                       "b": jnp.asarray(b, dtype)})
    return packed


# ----------------------------------------------------------------------------
# Pure-JAX reference (same math, no Pallas) for the correctness check.
# ----------------------------------------------------------------------------
def _reference_forward(x, hx, params, wiring):
    B = x.shape[0]
    ts = jnp.ones((B, 1), x.dtype)
    offsets = np.cumsum([0] + wiring["layer_sizes"])
    current = x
    new_states = []
    for l in range(len(wiring["layer_sizes"])):
        h_l = hx[:, offsets[l]:offsets[l + 1]]
        p = params[l]
        xh = jnp.concatenate([current, h_l], axis=1)
        ff1 = jnp.tanh(xh @ p["w1"] + p["b1"])
        ff2 = jnp.tanh(xh @ p["w2"] + p["b2"])
        t_interp = jax.nn.sigmoid((xh @ p["wa"] + p["ba"]) * ts + (xh @ p["wb"] + p["bb"]))
        new_h = ff1 * (1.0 - t_interp) + t_interp * ff2
        new_states.append(new_h)
        current = new_h
    new_hx = jnp.concatenate(new_states, axis=1)
    out_idx = np.asarray(wiring["output_neuron_indices"], dtype=np.int32)
    return new_hx[:, out_idx], new_hx


if __name__ == "__main__":
    batch = 2
    wiring = build_wiring(input_dim=6, layer_sizes=(10, 8, 4), seed=0)

    key = jax.random.PRNGKey(0)
    kp, kx, kh = jax.random.split(key, 3)
    params = init_params(wiring, kp)
    packed_params = pack_params(params, wiring)

    x = jax.random.normal(kx, (batch, wiring["input_dim"]), jnp.float32)
    hx = jax.random.normal(kh, (batch, wiring["units"]), jnp.float32)

    out, new_hx = efficient_wired_cfc_forward(x, hx, packed_params, wiring)
    out = jax.block_until_ready(out)
    new_hx = jax.block_until_ready(new_hx)

    ref_out, ref_hx = _reference_forward(x, hx, params, wiring)
    np.testing.assert_allclose(np.asarray(out), np.asarray(ref_out), rtol=1e-4, atol=1e-4)
    np.testing.assert_allclose(np.asarray(new_hx), np.asarray(ref_hx), rtol=1e-4, atol=1e-4)

    assert out.shape == (batch, len(wiring["output_neuron_indices"]))
    assert new_hx.shape == (batch, wiring["units"])
    print("KERNEL_OK")
</pallas_src>

<mosaic_0001>
module attributes {stable_mosaic.version = 11 : i64} {
  func.func @kernel(%arg0: memref<2x6xf32, #tpu.memory_space<vmem>>, %arg1: memref<2x22xf32, #tpu.memory_space<vmem>>, %arg2: memref<2x1xf32, #tpu.memory_space<vmem>>, %arg3: memref<6x512xf32, #tpu.memory_space<vmem>>, %arg4: memref<22x512xf32, #tpu.memory_space<vmem>>, %arg5: memref<1x512xf32, #tpu.memory_space<vmem>>, %arg6: memref<128x512xf32, #tpu.memory_space<vmem>>, %arg7: memref<22x512xf32, #tpu.memory_space<vmem>>, %arg8: memref<1x512xf32, #tpu.memory_space<vmem>>, %arg9: memref<128x512xf32, #tpu.memory_space<vmem>>, %arg10: memref<22x512xf32, #tpu.memory_space<vmem>>, %arg11: memref<1x512xf32, #tpu.memory_space<vmem>>, %arg12: memref<2x22xf32, #tpu.memory_space<vmem>>, %arg13: memref<2x4xf32, #tpu.memory_space<vmem>>) attributes {dimension_semantics = [], scalar_prefetch = 0 : i64, scratch_operands = 0 : i64, tpu.core_type = #tpu.core_type<tc>} {
    %c0 = arith.constant 0 : index
    %c0_0 = arith.constant 0 : index
    %0 = vector.load %arg1[%c0, %c0_0] : memref<2x22xf32, #tpu.memory_space<vmem>>, vector<2x22xf32>
    %c0_1 = arith.constant 0 : index
    %c0_2 = arith.constant 0 : index
    %1 = vector.load %arg2[%c0_1, %c0_2] : memref<2x1xf32, #tpu.memory_space<vmem>>, vector<2x1xf32>
    %2 = vector.shape_cast %1 : vector<2x1xf32> to vector<2x1xf32>
    %3 = vector.broadcast %2 : vector<2x1xf32> to vector<2x128xf32>
    %c0_3 = arith.constant 0 : index
    %c0_4 = arith.constant 0 : index
    %4 = vector.load %arg0[%c0_3, %c0_4] : memref<2x6xf32, #tpu.memory_space<vmem>>, vector<2x6xf32>
    %c0_5 = arith.constant 0 : index
    %c0_6 = arith.constant 0 : index
    %5 = vector.load %arg3[%c0_5, %c0_6] : memref<6x512xf32, #tpu.memory_space<vmem>>, vector<6x512xf32>
    %c0_7 = arith.constant 0 : index
    %c0_8 = arith.constant 0 : index
    %6 = vector.load %arg4[%c0_7, %c0_8] : memref<22x512xf32, #tpu.memory_space<vmem>>, vector<22x512xf32>
    %c0_9 = arith.constant 0 : index
    %c0_10 = arith.constant 0 : index
    %7 = vector.load %arg5[%c0_9, %c0_10] : memref<1x512xf32, #tpu.memory_space<vmem>>, vector<1x512xf32>
    %cst = arith.constant dense<0.000000e+00> : vector<2x512xf32>
    %8 = tpu.matmul %4, %5, %cst {dimension_numbers = #tpu.dot_dimension_numbers<[1], [0], [0], [1], [0, 0, 1, 1], [], []>} : vector<2x6xf32>, vector<6x512xf32>, vector<2x512xf32> -> vector<2x512xf32>
    %cst_11 = arith.constant dense<0.000000e+00> : vector<2x512xf32>
    %9 = tpu.matmul %0, %6, %cst_11 {dimension_numbers = #tpu.dot_dimension_numbers<[1], [0], [0], [1], [0, 0, 1, 1], [], []>} : vector<2x22xf32>, vector<22x512xf32>, vector<2x512xf32> -> vector<2x512xf32>
    %10 = arith.addf %8, %9 : vector<2x512xf32>
    %11 = vector.broadcast %7 : vector<1x512xf32> to vector<2x512xf32>
    %12 = arith.addf %10, %11 : vector<2x512xf32>
    %13 = vector.extract_strided_slice %12 {offsets = [0, 0], sizes = [2, 128], strides = [1, 1]} : vector<2x512xf32> to vector<2x128xf32>
    %14 = math.tanh %13 : vector<2x128xf32>
    %15 = vector.extract_strided_slice %12 {offsets = [0, 128], sizes = [2, 128], strides = [1, 1]} : vector<2x512xf32> to vector<2x128xf32>
    %16 = math.tanh %15 : vector<2x128xf32>
    %17 = vector.extract_strided_slice %12 {offsets = [0, 256], sizes = [2, 128], strides = [1, 1]} : vector<2x512xf32> to vector<2x128xf32>
    %18 = vector.extract_strided_slice %12 {offsets = [0, 384], sizes = [2, 128], strides = [1, 1]} : vector<2x512xf32> to vector<2x128xf32>
    %19 = arith.mulf %17, %3 : vector<2x128xf32>
    %20 = arith.addf %19, %18 : vector<2x128xf32>
    %21 = arith.negf %20 : vector<2x128xf32>
    %22 = math.exp %21 : vector<2x128xf32>
    %cst_12 = arith.constant 1.000000e+00 : f32
    %23 = vector.broadcast %cst_12 : f32 to vector<2x128xf32>
    %24 = arith.addf %23, %22 : vector<2x128xf32>
    %25 = arith.divf %23, %24 : vector<2x128xf32>
    %cst_13 = arith.constant 1.000000e+00 : f32
    %26 = vector.broadcast %cst_13 : f32 to vector<2x128xf32>
    %27 = arith.subf %26, %25 : vector<2x128xf32>
    %28 = arith.mulf %14, %27 : vector<2x128xf32>
    %29 = arith.mulf %25, %16 : vector<2x128xf32>
    %30 = arith.addf %28, %29 : vector<2x128xf32>
    %31 = vector.extract_strided_slice %30 {offsets = [0, 0], sizes = [2, 10], strides = [1, 1]} : vector<2x128xf32> to vector<2x10xf32>
    %c0_14 = arith.constant 0 : index
    %c0_15 = arith.constant 0 : index
    %32 = vector.load %arg12[%c0_14, %c0_15] : memref<2x22xf32, #tpu.memory_space<vmem>>, vector<2x10xf32>
    tpu.vector_store %arg12[%c0_14, %c0_15], %31 {strides = array<i32>} : memref<2x22xf32, #tpu.memory_space<vmem>>, vector<2x10xf32>,
    %c0_16 = arith.constant 0 : index
    %c0_17 = arith.constant 0 : index
    %33 = vector.load %arg6[%c0_16, %c0_17] : memref<128x512xf32, #tpu.memory_space<vmem>>, vector<128x512xf32>
    %c0_18 = arith.constant 0 : index
    %c0_19 = arith.constant 0 : index
    %34 = vector.load %arg7[%c0_18, %c0_19] : memref<22x512xf32, #tpu.memory_space<vmem>>, vector<22x512xf32>
    %c0_20 = arith.constant 0 : index
    %c0_21 = arith.constant 0 : index
    %35 = vector.load %arg8[%c0_20, %c0_21] : memref<1x512xf32, #tpu.memory_space<vmem>>, vector<1x512xf32>
    %cst_22 = arith.constant dense<0.000000e+00> : vector<2x512xf32>
    %36 = tpu.matmul %30, %33, %cst_22 {dimension_numbers = #tpu.dot_dimension_numbers<[1], [0], [0], [1], [0, 0, 1, 1], [], []>} : vector<2x128xf32>, vector<128x512xf32>, vector<2x512xf32> -> vector<2x512xf32>
    %cst_23 = arith.constant dense<0.000000e+00> : vector<2x512xf32>
    %37 = tpu.matmul %0, %34, %cst_23 {dimension_numbers = #tpu.dot_dimension_numbers<[1], [0], [0], [1], [0, 0, 1, 1], [], []>} : vector<2x22xf32>, vector<22x512xf32>, vector<2x512xf32> -> vector<2x512xf32>
    %38 = arith.addf %36, %37 : vector<2x512xf32>
    %39 = vector.broadcast %35 : vector<1x512xf32> to vector<2x512xf32>
    %40 = arith.addf %38, %39 : vector<2x512xf32>
    %41 = vector.extract_strided_slice %40 {offsets = [0, 0], sizes = [2, 128], strides = [1, 1]} : vector<2x512xf32> to vector<2x128xf32>
    %42 = math.tanh %41 : vector<2x128xf32>
    %43 = vector.extract_strided_slice %40 {offsets = [0, 128], sizes = [2, 128], strides = [1, 1]} : vector<2x512xf32> to vector<2x128xf32>
    %44 = math.tanh %43 : vector<2x128xf32>
    %45 = vector.extract_strided_slice %40 {offsets = [0, 256], sizes = [2, 128], strides = [1, 1]} : vector<2x512xf32> to vector<2x128xf32>
    %46 = vector.extract_strided_slice %40 {offsets = [0, 384], sizes = [2, 128], strides = [1, 1]} : vector<2x512xf32> to vector<2x128xf32>
    %47 = arith.mulf %45, %3 : vector<2x128xf32>
    %48 = arith.addf %47, %46 : vector<2x128xf32>
    %49 = arith.negf %48 : vector<2x128xf32>
    %50 = math.exp %49 : vector<2x128xf32>
    %cst_24 = arith.constant 1.000000e+00 : f32
    %51 = vector.broadcast %cst_24 : f32 to vector<2x128xf32>
    %52 = arith.addf %51, %50 : vector<2x128xf32>
    %53 = arith.divf %51, %52 : vector<2x128xf32>
    %cst_25 = arith.constant 1.000000e+00 : f32
    %54 = vector.broadcast %cst_25 : f32 to vector<2x128xf32>
    %55 = arith.subf %54, %53 : vector<2x128xf32>
    %56 = arith.mulf %42, %55 : vector<2x128xf32>
    %57 = arith.mulf %53, %44 : vector<2x128xf32>
    %58 = arith.addf %56, %57 : vector<2x128xf32>
    %59 = vector.extract_strided_slice %58 {offsets = [0, 0], sizes = [2, 8], strides = [1, 1]} : vector<2x128xf32> to vector<2x8xf32>
    %c0_26 = arith.constant 0 : index
    %c10 = arith.constant 10 : index
    %60 = vector.load %arg12[%c0_26, %c10] : memref<2x22xf32, #tpu.memory_space<vmem>>, vector<2x8xf32>
    tpu.vector_store %arg12[%c0_26, %c10], %59 {strides = array<i32>} : memref<2x22xf32, #tpu.memory_space<vmem>>, vector<2x8xf32>,
    %c0_27 = arith.constant 0 : index
    %c0_28 = arith.constant 0 : index
    %61 = vector.load %arg9[%c0_27, %c0_28] : memref<128x512xf32, #tpu.memory_space<vmem>>, vector<128x512xf32>
    %c0_29 = arith.constant 0 : index
    %c0_30 = arith.constant 0 : index
    %62 = vector.load %arg10[%c0_29, %c0_30] : memref<22x512xf32, #tpu.memory_space<vmem>>, vector<22x512xf32>
    %c0_31 = arith.constant 0 : index
    %c0_32 = arith.constant 0 : index
    %63 = vector.load %arg11[%c0_31, %c0_32] : memref<1x512xf32, #tpu.memory_space<vmem>>, vector<1x512xf32>
    %cst_33 = arith.constant dense<0.000000e+00> : vector<2x512xf32>
    %64 = tpu.matmul %58, %61, %cst_33 {dimension_numbers = #tpu.dot_dimension_numbers<[1], [0], [0], [1], [0, 0, 1, 1], [], []>} : vector<2x128xf32>, vector<128x512xf32>, vector<2x512xf32> -> vector<2x512xf32>
    %cst_34 = arith.constant dense<0.000000e+00> : vector<2x512xf32>
    %65 = tpu.matmul %0, %62, %cst_34 {dimension_numbers = #tpu.dot_dimension_numbers<[1], [0], [0], [1], [0, 0, 1, 1], [], []>} : vector<2x22xf32>, vector<22x512xf32>, vector<2x512xf32> -> vector<2x512xf32>
    %66 = arith.addf %64, %65 : vector<2x512xf32>
    %67 = vector.broadcast %63 : vector<1x512xf32> to vector<2x512xf32>
    %68 = arith.addf %66, %67 : vector<2x512xf32>
    %69 = vector.extract_strided_slice %68 {offsets = [0, 0], sizes = [2, 128], strides = [1, 1]} : vector<2x512xf32> to vector<2x128xf32>
    %70 = math.tanh %69 : vector<2x128xf32>
    %71 = vector.extract_strided_slice %68 {offsets = [0, 128], sizes = [2, 128], strides = [1, 1]} : vector<2x512xf32> to vector<2x128xf32>
    %72 = math.tanh %71 : vector<2x128xf32>
    %73 = vector.extract_strided_slice %68 {offsets = [0, 256], sizes = [2, 128], strides = [1, 1]} : vector<2x512xf32> to vector<2x128xf32>
    %74 = vector.extract_strided_slice %68 {offsets = [0, 384], sizes = [2, 128], strides = [1, 1]} : vector<2x512xf32> to vector<2x128xf32>
    %75 = arith.mulf %73, %3 : vector<2x128xf32>
    %76 = arith.addf %75, %74 : vector<2x128xf32>
    %77 = arith.negf %76 : vector<2x128xf32>
    %78 = math.exp %77 : vector<2x128xf32>
    %cst_35 = arith.constant 1.000000e+00 : f32
    %79 = vector.broadcast %cst_35 : f32 to vector<2x128xf32>
    %80 = arith.addf %79, %78 : vector<2x128xf32>
    %81 = arith.divf %79, %80 : vector<2x128xf32>
    %cst_36 = arith.constant 1.000000e+00 : f32
    %82 = vector.broadcast %cst_36 : f32 to vector<2x128xf32>
    %83 = arith.subf %82, %81 : vector<2x128xf32>
    %84 = arith.mulf %70, %83 : vector<2x128xf32>
    %85 = arith.mulf %81, %72 : vector<2x128xf32>
    %86 = arith.addf %84, %85 : vector<2x128xf32>
    %87 = vector.extract_strided_slice %86 {offsets = [0, 0], sizes = [2, 4], strides = [1, 1]} : vector<2x128xf32> to vector<2x4xf32>
    %c0_37 = arith.constant 0 : index
    %c18 = arith.constant 18 : index
    %88 = vector.load %arg12[%c0_37, %c18] : memref<2x22xf32, #tpu.memory_space<vmem>>, vector<2x4xf32>
    tpu.vector_store %arg12[%c0_37, %c18], %87 {strides = array<i32>} : memref<2x22xf32, #tpu.memory_space<vmem>>, vector<2x4xf32>,
    %89 = vector.extract_strided_slice %86 {offsets = [0, 0], sizes = [2, 4], strides = [1, 1]} : vector<2x128xf32> to vector<2x4xf32>
    %c0_38 = arith.constant 0 : index
    %c0_39 = arith.constant 0 : index
    %90 = vector.load %arg13[%c0_38, %c0_39] : memref<2x4xf32, #tpu.memory_space<vmem>>, vector<2x4xf32>
    tpu.vector_store %arg13[%c0_38, %c0_39], %89 {strides = array<i32>} : memref<2x4xf32, #tpu.memory_space<vmem>>, vector<2x4xf32>,
    return
  }
}

</mosaic_0001>

<llo_original>
// kernel: tpu_custom_call.1
$region0: #{tpu_custom_call.1}
  #allocation0 [shape = 'u32[]', space=smem, size = 0x4, offset = 0x4, fixed_abs, tag = 'smem constant byte address 0x4 - core index']
  #allocation1 [shape = 'u32[144,128]{1,0:T(1,128)}', space=vmem, size = 0x12000, scoped, tag = 'internal scratch']
  %s0 = inlined_call_operand.vmem [shape: f32[2,6], index: 0, kind: input, shape index: {}]
  %s1 = inlined_call_operand.hbm [shape: f32[2,22], index: 1, kind: input, shape index: {}]
  %s2 = inlined_call_operand.vmem [shape: f32[2,1], index: 2, kind: input, shape index: {}]
  %s3 = inlined_call_operand.hbm [shape: f32[6,512], index: 3, kind: input, shape index: {}]
  %s4 = inlined_call_operand.hbm [shape: f32[22,512], index: 4, kind: input, shape index: {}]
  %s5 = inlined_call_operand.vmem [shape: f32[1,512], index: 5, kind: input, shape index: {}]
  %s6 = inlined_call_operand.hbm [shape: f32[128,512], index: 6, kind: input, shape index: {}]
  %s7 = inlined_call_operand.hbm [shape: f32[22,512], index: 7, kind: input, shape index: {}]
  %s8 = inlined_call_operand.vmem [shape: f32[1,512], index: 8, kind: input, shape index: {}]
  %s9 = inlined_call_operand.hbm [shape: f32[128,512], index: 9, kind: input, shape index: {}]
  %s10 = inlined_call_operand.hbm [shape: f32[22,512], index: 10, kind: input, shape index: {}]
  %s11 = inlined_call_operand.vmem [shape: f32[1,512], index: 11, kind: input, shape index: {}]
  %s12 = inlined_call_operand.hbm [shape: f32[2,22], index: 12, kind: output, shape index: {0}]
  %s13 = inlined_call_operand.hbm [shape: f32[2,4], index: 13, kind: output, shape index: {1}]
  %14 = xla_tuple %s12, %s13
  %s15 = sld [smem:[#allocation0]]
  $region94: #{tpu_custom_call.1} parent=0
    _
  %s17 = ssub.s32 1, %s15
  %s18 = scalar_select 0, %s17, %s15
  $region1: #{tpu_custom_call.1} parent=0
    #allocation2 [shape = 'u8[1024]{0}', space=vmem, size = 0x400, scoped, tag = 'input window, operand 1, single buffered']
    #allocation3 [shape = 's32[1]{0}', space=sflag, size = 0x4, scoped, tag = 'scoped memory for tpu_custom_call.1']
    #allocation4 [shape = 's32[1]{0}', space=sflag, size = 0x4, scoped, tag = 'scoped memory for tpu_custom_call.1']
    #allocation5 [shape = 'u8[16384]{0}', space=vmem, size = 0x4000, scoped, tag = 'input window, operand 3, single buffered']
    #allocation6 [shape = 's32[1]{0}', space=sflag, size = 0x4, scoped, tag = 'scoped memory for tpu_custom_call.1']
    #allocation7 [shape = 'u8[49152]{0}', space=vmem, size = 0xc000, scoped, tag = 'input window, operand 4, single buffered']
    #allocation8 [shape = 'u8[262144]{0}', space=vmem, size = 0x40000, scoped, tag = 'input window, operand 6, single buffered']
    #allocation9 [shape = 's32[1]{0}', space=sflag, size = 0x4, scoped, tag = 'scoped memory for tpu_custom_call.1']
    #allocation10 [shape = 'u8[49152]{0}', space=vmem, size = 0xc000, scoped, tag = 'input window, operand 7, single buffered']
    #allocation11 [shape = 'u8[262144]{0}', space=vmem, size = 0x40000, scoped, tag = 'input window, operand 9, single buffered']
    #allocation12 [shape = 's32[1]{0}', space=sflag, size = 0x4, scoped, tag = 'scoped memory for tpu_custom_call.1']
    #allocation13 [shape = 'u8[49152]{0}', space=vmem, size = 0xc000, scoped, tag = 'input window, operand 10, single buffered']
    #allocation14 [shape = 'u8[1024]{0}', space=vmem, size = 0x400, scoped, tag = 'output window, operand 0, single buffered']
    #allocation15 [shape = 'u8[1024]{0}', space=vmem, size = 0x400, scoped, tag = 'output window, operand 1, single buffered']
    #allocation16 [shape = 's32[1]{0}', space=sflag, size = 0x4, scoped, tag = 'scoped memory for tpu_custom_call.1']
    %19 = vsyncpa [#allocation3], 0
    %20 = vsyncpa [#allocation6], 0
    %21 = vsyncpa [#allocation9], 0
    %22 = vsyncpa [#allocation12], 0
    %23 = vsyncpa [#allocation4], 0
    %24 = vsyncpa [#allocation16], 0
    // Predicated region
    $region2: #{tpu_custom_call.1} parent=1 // pred_check
      _
    $region3: #{tpu_custom_call.1} parent=1 // pred_check_branch
      %26 = sbr.rel (0) target = $region5
    $region4: #{tpu_custom_call.1} parent=1 // pred_region
      _
    $region5: #{tpu_custom_call.1} parent=1 // pred_fallthru
      _
    // Predicated region
    $region6: #{tpu_custom_call.1} parent=1 // pred_check
      _
    $region7: #{tpu_custom_call.1} parent=1 // pred_check_branch
      %28 = sbr.rel (0) target = $region9
    $region8: #{tpu_custom_call.1} parent=1 // pred_region
      %s30 = ssub.s32 32, 32
      %31 = vsyncadd [#allocation3], %s30
      %s33 = sshll.u32 [#allocation2], 4
      %s34 = int_to_ptr.vmem [resolvable:$true] %s33
      %36 = dma.hbm_to_vmem [thread:$0]  %s1, 32, %s34, [#allocation3]
    $region9: #{tpu_custom_call.1} parent=1 // pred_fallthru
      _
    // Predicated region
    $region10: #{tpu_custom_call.1} parent=1 // pred_check
      _
    $region11: #{tpu_custom_call.1} parent=1 // pred_check_branch
      %38 = sbr.rel (0) target = $region13
    $region12: #{tpu_custom_call.1} parent=1 // pred_region
      _
    $region13: #{tpu_custom_call.1} parent=1 // pred_fallthru
      _
    // Predicated region
    $region14: #{tpu_custom_call.1} parent=1 // pred_check
      _
    $region15: #{tpu_custom_call.1} parent=1 // pred_check_branch
      %40 = sbr.rel (0) target = $region17
    $region16: #{tpu_custom_call.1} parent=1 // pred_region
      %s42 = ssub.s32 512, 512
      %43 = vsyncadd [#allocation6], %s42
      %s45 = sshll.u32 [#allocation5], 4
      %s46 = int_to_ptr.vmem [resolvable:$true] %s45
      %48 = dma.hbm_to_vmem [thread:$0]  %s3, 512, %s46, [#allocation6]
    $region17: #{tpu_custom_call.1} parent=1 // pred_fallthru
      _
    // Predicated region
    $region18: #{tpu_custom_call.1} parent=1 // pred_check
      _
    $region19: #{tpu_custom_call.1} parent=1 // pred_check_branch
      %50 = sbr.rel (0) target = $region21
    $region20: #{tpu_custom_call.1} parent=1 // pred_region
      %s52 = ssub.s32 1536, 1536
      %53 = vsyncadd [#allocation6], %s52
      %s54 = sshll.u32 [#allocation7], 4
      %s55 = int_to_ptr.vmem [resolvable:$true] %s54
      %60 = dma.hbm_to_vmem [thread:$0]  %s4, 1536, %s55, [#allocation6], 512, 512, 32
    $region21: #{tpu_custom_call.1} parent=1 // pred_fallthru
      _
    // Predicated region
    $region22: #{tpu_custom_call.1} parent=1 // pred_check
      _
    $region23: #{tpu_custom_call.1} parent=1 // pred_check_branch
      %62 = sbr.rel (0) target = $region25
    $region24: #{tpu_custom_call.1} parent=1 // pred_region
      _
    $region25: #{tpu_custom_call.1} parent=1 // pred_fallthru
      _
    // Predicated region
    $region26: #{tpu_custom_call.1} parent=1 // pred_check
      _
    $region27: #{tpu_custom_call.1} parent=1 // pred_check_branch
      %64 = sbr.rel (0) target = $region29
    $region28: #{tpu_custom_call.1} parent=1 // pred_region
      %s66 = ssub.s32 8192, 8192
      %67 = vsyncadd [#allocation9], %s66
      %s68 = sshll.u32 [#allocation8], 4
      %s69 = int_to_ptr.vmem [resolvable:$true] %s68
      %74 = dma.hbm_to_vmem [thread:$0]  %s6, 8192, %s69, [#allocation9], 512, 512, 32
    $region29: #{tpu_custom_call.1} parent=1 // pred_fallthru
      _
    // Predicated region
    $region30: #{tpu_custom_call.1} parent=1 // pred_check
      _
    $region31: #{tpu_custom_call.1} parent=1 // pred_check_branch
      %76 = sbr.rel (0) target = $region33
    $region32: #{tpu_custom_call.1} parent=1 // pred_region
      %s78 = ssub.s32 1536, 1536
      %79 = vsyncadd [#allocation9], %s78
      %s80 = sshll.u32 [#allocation10], 4
      %s81 = int_to_ptr.vmem [resolvable:$true] %s80
      %86 = dma.hbm_to_vmem [thread:$0]  %s7, 1536, %s81, [#allocation9], 512, 512, 32
    $region33: #{tpu_custom_call.1} parent=1 // pred_fallthru
      _
    // Predicated region
    $region34: #{tpu_custom_call.1} parent=1 // pred_check
      _
    $region35: #{tpu_custom_call.1} parent=1 // pred_check_branch
      %88 = sbr.rel (0) target = $region37
    $region36: #{tpu_custom_call.1} parent=1 // pred_region
      _
    $region37: #{tpu_custom_call.1} parent=1 // pred_fallthru
      _
    // Predicated region
    $region38: #{tpu_custom_call.1} parent=1 // pred_check
      _
    $region39: #{tpu_custom_call.1} parent=1 // pred_check_branch
      %90 = sbr.rel (0) target = $region41
    $region40: #{tpu_custom_call.1} parent=1 // pred_region
      %s92 = ssub.s32 8192, 8192
      %93 = vsyncadd [#allocation12], %s92
      %s94 = sshll.u32 [#allocation11], 4
      %s95 = int_to_ptr.vmem [resolvable:$true] %s94
      %100 = dma.hbm_to_vmem [thread:$0]  %s9, 8192, %s95, [#allocation12], 512, 512, 32
    $region41: #{tpu_custom_call.1} parent=1 // pred_fallthru
      _
    // Predicated region
    $region42: #{tpu_custom_call.1} parent=1 // pred_check
      _
    $region43: #{tpu_custom_call.1} parent=1 // pred_check_branch
      %102 = sbr.rel (0) target = $region45
    $region44: #{tpu_custom_call.1} parent=1 // pred_region
      %s104 = ssub.s32 1536, 1536
      %105 = vsyncadd [#allocation12], %s104
      %s106 = sshll.u32 [#allocation13], 4
      %s107 = int_to_ptr.vmem [resolvable:$true] %s106
      %112 = dma.hbm_to_vmem [thread:$0]  %s10, 1536, %s107, [#allocation12], 512, 512, 32
    $region45: #{tpu_custom_call.1} parent=1 // pred_fallthru
      _
    // Predicated region
    $region46: #{tpu_custom_call.1} parent=1 // pred_check
      _
    $region47: #{tpu_custom_call.1} parent=1 // pred_check_branch
      %114 = sbr.rel (0) target = $region49
    $region48: #{tpu_custom_call.1} parent=1 // pred_region
      _
    $region49: #{tpu_custom_call.1} parent=1 // pred_fallthru
      _
    // Predicated region
    $region50: #{tpu_custom_call.1} parent=1 // pred_check
      _
    $region51: #{tpu_custom_call.1} parent=1 // pred_check_branch
      %116 = sbr.rel (0) target = $region53
    $region52: #{tpu_custom_call.1} parent=1 // pred_region
      %117 = dma.done [#allocation3], 32
    $region53: #{tpu_custom_call.1} parent=1 // pred_fallthru
      _
    // Predicated region
    $region54: #{tpu_custom_call.1} parent=1 // pred_check
      _
    $region55: #{tpu_custom_call.1} parent=1 // pred_check_branch
      %119 = sbr.rel (0) target = $region57
    $region56: #{tpu_custom_call.1} parent=1 // pred_region
      %120 = dma.done [#allocation6], 512
    $region57: #{tpu_custom_call.1} parent=1 // pred_fallthru
      _
    // Predicated region
    $region58: #{tpu_custom_call.1} parent=1 // pred_check
      _
    $region59: #{tpu_custom_call.1} parent=1 // pred_check_branch
      %122 = sbr.rel (0) target = $region61
    $region60: #{tpu_custom_call.1} parent=1 // pred_region
      %123 = dma.done [#allocation6], 1536
    $region61: #{tpu_custom_call.1} parent=1 // pred_fallthru
      _
    // Predicated region
    $region62: #{tpu_custom_call.1} parent=1 // pred_check
      _
    $region63: #{tpu_custom_call.1} parent=1 // pred_check_branch
      %125 = sbr.rel (0) target = $region65
    $region64: #{tpu_custom_call.1} parent=1 // pred_region
      %126 = dma.done [#allocation9], 8192
    $region65: #{tpu_custom_call.1} parent=1 // pred_fallthru
      _
    // Predicated region
    $region66: #{tpu_custom_call.1} parent=1 // pred_check
      _
    $region67: #{tpu_custom_call.1} parent=1 // pred_check_branch
      %128 = sbr.rel (0) target = $region69
    $region68: #{tpu_custom_call.1} parent=1 // pred_region
      %129 = dma.done [#allocation9], 1536
    $region69: #{tpu_custom_call.1} parent=1 // pred_fallthru
      _
    // Predicated region
    $region70: #{tpu_custom_call.1} parent=1 // pred_check
      _
    $region71: #{tpu_custom_call.1} parent=1 // pred_check_branch
      %131 = sbr.rel (0) target = $region73
    $region72: #{tpu_custom_call.1} parent=1 // pred_region
      %132 = dma.done [#allocation12], 8192
    $region73: #{tpu_custom_call.1} parent=1 // pred_fallthru
      _
    // Predicated region
    $region74: #{tpu_custom_call.1} parent=1 // pred_check
      _
    $region75: #{tpu_custom_call.1} parent=1 // pred_check_branch
      %134 = sbr.rel (0) target = $region77
    $region76: #{tpu_custom_call.1} parent=1 // pred_region
      %135 = dma.done [#allocation12], 1536
    $region77: #{tpu_custom_call.1} parent=1 // pred_fallthru
      _
    %v136 = vld [vmem:[#allocation2] sm:$0x3]
    %v137 = vld [vmem:[%s2] sm:$0x3]
    %139 = vset.pattern.permute.xlu0 0
    %140 = vperm.xlu0 %139, %v137
    %v141 = vpop.permute.xlu0 %140
    %v143 = vld [vmem:[%s0] sm:$0x3]
    %v144 = vld [vmem:[#allocation5] sm:$0x3f]
    %v145 = vld [vmem:[#allocation5 + $0x8] sm:$0x3f]
    %v146 = vld [vmem:[#allocation5 + $0x10] sm:$0x3f]
    %v147 = vld [vmem:[#allocation5 + $0x18] sm:$0x3f]
    %v148 = vld [vmem:[#allocation7] sm:$0xff]
    %v149 = vld [vmem:[#allocation7 + $0x8] sm:$0xff]
    %v150 = vld [vmem:[#allocation7 + $0x10] sm:$0xff]
    %v151 = vld [vmem:[#allocation7 + $0x18] sm:$0xff]
    %v152 = vld [vmem:[#allocation7 + $0x20] sm:$0xff]
    %v153 = vld [vmem:[#allocation7 + $0x28] sm:$0xff]
    %v154 = vld [vmem:[#allocation7 + $0x30] sm:$0xff]
    %v155 = vld [vmem:[#allocation7 + $0x38] sm:$0xff]
    %v156 = vld [vmem:[#allocation7 + $0x40] sm:$0x3f]
    %v157 = vld [vmem:[#allocation7 + $0x48] sm:$0x3f]
    %v158 = vld [vmem:[#allocation7 + $0x50] sm:$0x3f]
    %v159 = vld [vmem:[#allocation7 + $0x58] sm:$0x3f]
    %v160 = vld [vmem:[%s5] sm:$0xf]
    %vm161 = vcmask 179200
    %v163 = vsel %vm161, %v136, 0
    %vm165 = vcmask 1045504
    %v167 = vsel %vm165, %v156, 0
    %v170 = vsel %vm165, %v157, 0
    %v173 = vsel %vm165, %v158, 0
    %v176 = vsel %vm165, %v159, 0
    %178 = vmatprep.subr.mxu0 %v149
    %179 = vmatpush1.msra.mxu0 %v148
    %180 = vmatprep.subr.mxu0 %v153
    %181 = vmatpush1.msra.mxu0 %v152
    %182 = vmatprep.subr.mxu0 %v170
    %183 = vmatpush1.msra.mxu0 %v167
    %184 = vmatprep.subr.mxu0 0.0
    %185 = vmatpush1.msra.mxu0 0.0
    %186 = vmatprep.subr.mxu0 0.0
    %187 = vmatpush1.msra.mxu0 0.0
    %188 = vmatprep.subr.mxu0 0.0
    %189 = vmatpush1.msra.mxu0 0.0
    %190 = vmatprep.subr.mxu0 0.0
    %191 = vmatpush1.msra.mxu0 0.0
    %192 = vmatprep.subr.mxu0 0.0
    %193 = vmatpush1.msra.mxu0 0.0
    %194 = vmatprep.subr.mxu0 0.0
    %195 = vmatpush1.msra.mxu0 0.0
    %196 = vmatprep.subr.mxu0 0.0
    %197 = vmatpush1.msra.mxu0 0.0
    %198 = vmatprep.subr.mxu0 0.0
    %199 = vmatpush1.msra.mxu0 0.0
    %200 = vmatprep.subr.mxu0 0.0
    %201 = vmatpush1.msra.mxu0 0.0
    %202 = vmatprep.subr.mxu0 0.0
    %203 = vmatpush1.msra.mxu0 0.0
    %204 = vmatprep.subr.mxu0 0.0
    %205 = vmatpush1.msra.mxu0 0.0
    %206 = vmatprep.subr.mxu0 0.0
    %207 = vmatpush1.msra.mxu0 0.0
    %208 = vmatprep.subr.mxu0 0.0
    %209 = vmatpush1.msra.mxu0 0.0
    %210 = vmatprep.subr.mxu0 0.0
    %211 = vmatpush1.msra.mxu0 0.0
    %212 = vmatprep.subr.mxu0 0.0
    %213 = vmatpush1.msra.mxu0 0.0
    %214 = vmatprep.subr.mxu0 0.0
    %215 = vmatpush1.msra.mxu0 0.0
    %216 = vmatprep.subr.mxu0 0.0
    %217 = vmatpush1.msra.mxu0 0.0
    %218 = vmatprep.subr.mxu0 0.0
    %219 = vmatpush1.msra.mxu0 0.0
    %220 = vmatprep.subr.mxu0 0.0
    %221 = vmatpush1.msra.mxu0 0.0
    %222 = vmatprep.subr.mxu0 0.0
    %223 = vmatpush1.msra.mxu0 0.0
    %224 = vmatprep.subr.mxu0 0.0
    %225 = vmatpush1.msra.mxu0 0.0
    %226 = vmatprep.subr.mxu0 0.0
    %227 = vmatpush1.msra.mxu0 0.0
    %228 = vmatprep.subr.mxu0 0.0
    %229 = vmatpush1.msra.mxu0 0.0
    %230 = vmatprep.subr.mxu0 0.0
    %231 = vmatpush1.msra.mxu0 0.0
    %232 = vmatprep.subr.mxu0 0.0
    %233 = vmatpush1.msra.mxu0 0.0
    %234 = vmatprep.subr.mxu0 0.0
    %235 = vmatpush1.msra.mxu0 0.0
    %236 = vmatprep.subr.mxu0 0.0
    %237 = vmatpush1.msra.mxu0 0.0
    %238 = vmatprep.subr.mxu0 0.0
    %239 = vmatpush1.msra.mxu0 0.0
    %240 = vmatprep.subr.mxu0 0.0
    %241 = vmatpush1.msra.mxu0 0.0
    %242 = vmatprep.mubr.f32.mxu0 0.0
    %243 = vmatmul.mubr.f32.gmra.mrb[0].mxu0 %v163
    %v244 = vpop.f32.mrb[0].mxu0
    %v245 = vadd.f32 0.0, %v244
    %v246 = vpop.f32.mrb[0].mxu0
    %v247 = vadd.f32 0.0, %v246
    %248 = vdwg.mxu0
    %249 = vmatprep.subr.mxu0 %v151
    %250 = vmatpush1.msra.mxu0 %v150
    %251 = vmatprep.subr.mxu0 %v155
    %252 = vmatpush1.msra.mxu0 %v154
    %253 = vmatprep.subr.mxu0 %v176
    %254 = vmatpush1.msra.mxu0 %v173
    %255 = vmatprep.subr.mxu0 0.0
    %256 = vmatpush1.msra.mxu0 0.0
    %257 = vmatprep.subr.mxu0 0.0
    %258 = vmatpush1.msra.mxu0 0.0
    %259 = vmatprep.subr.mxu0 0.0
    %260 = vmatpush1.msra.mxu0 0.0
    %261 = vmatprep.subr.mxu0 0.0
    %262 = vmatpush1.msra.mxu0 0.0
    %263 = vmatprep.subr.mxu0 0.0
    %264 = vmatpush1.msra.mxu0 0.0
    %265 = vmatprep.subr.mxu0 0.0
    %266 = vmatpush1.msra.mxu0 0.0
    %267 = vmatprep.subr.mxu0 0.0
    %268 = vmatpush1.msra.mxu0 0.0
    %269 = vmatprep.subr.mxu0 0.0
    %270 = vmatpush1.msra.mxu0 0.0
    %271 = vmatprep.subr.mxu0 0.0
    %272 = vmatpush1.msra.mxu0 0.0
    %273 = vmatprep.subr.mxu0 0.0
    %274 = vmatpush1.msra.mxu0 0.0
    %275 = vmatprep.subr.mxu0 0.0
    %276 = vmatpush1.msra.mxu0 0.0
    %277 = vmatprep.subr.mxu0 0.0
    %278 = vmatpush1.msra.mxu0 0.0
    %279 = vmatprep.subr.mxu0 0.0
    %280 = vmatpush1.msra.mxu0 0.0
    %281 = vmatprep.subr.mxu0 0.0
    %282 = vmatpush1.msra.mxu0 0.0
    %283 = vmatprep.subr.mxu0 0.0
    %284 = vmatpush1.msra.mxu0 0.0
    %285 = vmatprep.subr.mxu0 0.0
    %286 = vmatpush1.msra.mxu0 0.0
    %287 = vmatprep.subr.mxu0 0.0
    %288 = vmatpush1.msra.mxu0 0.0
    %289 = vmatprep.subr.mxu0 0.0
    %290 = vmatpush1.msra.mxu0 0.0
    %291 = vmatprep.subr.mxu0 0.0
    %292 = vmatpush1.msra.mxu0 0.0
    %293 = vmatprep.subr.mxu0 0.0
    %294 = vmatpush1.msra.mxu0 0.0
    %295 = vmatprep.subr.mxu0 0.0
    %296 = vmatpush1.msra.mxu0 0.0
    %297 = vmatprep.subr.mxu0 0.0
    %298 = vmatpush1.msra.mxu0 0.0
    %299 = vmatprep.subr.mxu0 0.0
    %300 = vmatpush1.msra.mxu0 0.0
    %301 = vmatprep.subr.mxu0 0.0
    %302 = vmatpush1.msra.mxu0 0.0
    %303 = vmatprep.subr.mxu0 0.0
    %304 = vmatpush1.msra.mxu0 0.0
    %305 = vmatprep.subr.mxu0 0.0
    %306 = vmatpush1.msra.mxu0 0.0
    %307 = vmatprep.subr.mxu0 0.0
    %308 = vmatpush1.msra.mxu0 0.0
    %309 = vmatprep.subr.mxu0 0.0
    %310 = vmatpush1.msra.mxu0 0.0
    %311 = vmatprep.subr.mxu0 0.0
    %312 = vmatpush1.msra.mxu0 0.0
    %313 = vmatprep.mubr.f32.mxu0 0.0
    %314 = vmatmul.mubr.f32.gmra.mrb[0].mxu0 %v163
    %v315 = vpop.f32.mrb[0].mxu0
    %v316 = vadd.f32 0.0, %v315
    %v317 = vpop.f32.mrb[0].mxu0
    %v318 = vadd.f32 0.0, %v317
    %319 = vdwg.mxu0
    %vm320 = vcmask 48128
    %v322 = vsel %vm320, %v143, 0
    %v325 = vsel %vm165, %v144, 0
    %v328 = vsel %vm165, %v145, 0
    %v331 = vsel %vm165, %v146, 0
    %v334 = vsel %vm165, %v147, 0
    %336 = vmatprep.subr.mxu0 %v328
    %337 = vmatpush1.msra.mxu0 %v325
    %338 = vmatprep.subr.mxu0 0.0
    %339 = vmatpush1.msra.mxu0 0.0
    %340 = vmatprep.subr.mxu0 0.0
    %341 = vmatpush1.msra.mxu0 0.0
    %342 = vmatprep.subr.mxu0 0.0
    %343 = vmatpush1.msra.mxu0 0.0
    %344 = vmatprep.subr.mxu0 0.0
    %345 = vmatpush1.msra.mxu0 0.0
    %346 = vmatprep.subr.mxu0 0.0
    %347 = vmatpush1.msra.mxu0 0.0
    %348 = vmatprep.subr.mxu0 0.0
    %349 = vmatpush1.msra.mxu0 0.0
    %350 = vmatprep.subr.mxu0 0.0
    %351 = vmatpush1.msra.mxu0 0.0
    %352 = vmatprep.subr.mxu0 0.0
    %353 = vmatpush1.msra.mxu0 0.0
    %354 = vmatprep.subr.mxu0 0.0
    %355 = vmatpush1.msra.mxu0 0.0
    %356 = vmatprep.subr.mxu0 0.0
    %357 = vmatpush1.msra.mxu0 0.0
    %358 = vmatprep.subr.mxu0 0.0
    %359 = vmatpush1.msra.mxu0 0.0
    %360 = vmatprep.subr.mxu0 0.0
    %361 = vmatpush1.msra.mxu0 0.0
    %362 = vmatprep.subr.mxu0 0.0
    %363 = vmatpush1.msra.mxu0 0.0
    %364 = vmatprep.subr.mxu0 0.0
    %365 = vmatpush1.msra.mxu0 0.0
    %366 = vmatprep.subr.mxu0 0.0
    %367 = vmatpush1.msra.mxu0 0.0
    %368 = vmatprep.subr.mxu0 0.0
    %369 = vmatpush1.msra.mxu0 0.0
    %370 = vmatprep.subr.mxu0 0.0
    %371 = vmatpush1.msra.mxu0 0.0
    %372 = vmatprep.subr.mxu0 0.0
    %373 = vmatpush1.msra.mxu0 0.0
    %374 = vmatprep.subr.mxu0 0.0
    %375 = vmatpush1.msra.mxu0 0.0
    %376 = vmatprep.subr.mxu0 0.0
    %377 = vmatpush1.msra.mxu0 0.0
    %378 = vmatprep.subr.mxu0 0.0
    %379 = vmatpush1.msra.mxu0 0.0
    %380 = vmatprep.subr.mxu0 0.0
    %381 = vmatpush1.msra.mxu0 0.0
    %382 = vmatprep.subr.mxu0 0.0
    %383 = vmatpush1.msra.mxu0 0.0
    %384 = vmatprep.subr.mxu0 0.0
    %385 = vmatpush1.msra.mxu0 0.0
    %386 = vmatprep.subr.mxu0 0.0
    %387 = vmatpush1.msra.mxu0 0.0
    %388 = vmatprep.subr.mxu0 0.0
    %389 = vmatpush1.msra.mxu0 0.0
    %390 = vmatprep.subr.mxu0 0.0
    %391 = vmatpush1.msra.mxu0 0.0
    %392 = vmatprep.subr.mxu0 0.0
    %393 = vmatpush1.msra.mxu0 0.0
    %394 = vmatprep.subr.mxu0 0.0
    %395 = vmatpush1.msra.mxu0 0.0
    %396 = vmatprep.subr.mxu0 0.0
    %397 = vmatpush1.msra.mxu0 0.0
    %398 = vmatprep.subr.mxu0 0.0
    %399 = vmatpush1.msra.mxu0 0.0
    %400 = vmatprep.mubr.f32.mxu0 0.0
    %401 = vmatmul.mubr.f32.gmra.mrb[0].mxu0 %v322
    %v402 = vpop.f32.mrb[0].mxu0
    %v403 = vadd.f32 %v245, %v402
    %v404 = vpop.f32.mrb[0].mxu0
    %v405 = vadd.f32 %v247, %v404
    %406 = vdwg.mxu0
    %407 = vmatprep.subr.mxu0 %v334
    %408 = vmatpush1.msra.mxu0 %v331
    %409 = vmatprep.subr.mxu0 0.0
    %410 = vmatpush1.msra.mxu0 0.0
    %411 = vmatprep.subr.mxu0 0.0
    %412 = vmatpush1.msra.mxu0 0.0
    %413 = vmatprep.subr.mxu0 0.0
    %414 = vmatpush1.msra.mxu0 0.0
    %415 = vmatprep.subr.mxu0 0.0
    %416 = vmatpush1.msra.mxu0 0.0
    %417 = vmatprep.subr.mxu0 0.0
    %418 = vmatpush1.msra.mxu0 0.0
    %419 = vmatprep.subr.mxu0 0.0
    %420 = vmatpush1.msra.mxu0 0.0
    %421 = vmatprep.subr.mxu0 0.0
    %422 = vmatpush1.msra.mxu0 0.0
    %423 = vmatprep.subr.mxu0 0.0
    %424 = vmatpush1.msra.mxu0 0.0
    %425 = vmatprep.subr.mxu0 0.0
    %426 = vmatpush1.msra.mxu0 0.0
    %427 = vmatprep.subr.mxu0 0.0
    %428 = vmatpush1.msra.mxu0 0.0
    %429 = vmatprep.subr.mxu0 0.0
    %430 = vmatpush1.msra.mxu0 0.0
    %431 = vmatprep.subr.mxu0 0.0
    %432 = vmatpush1.msra.mxu0 0.0
    %433 = vmatprep.subr.mxu0 0.0
    %434 = vmatpush1.msra.mxu0 0.0
    %435 = vmatprep.subr.mxu0 0.0
    %436 = vmatpush1.msra.mxu0 0.0
    %437 = vmatprep.subr.mxu0 0.0
    %438 = vmatpush1.msra.mxu0 0.0
    %439 = vmatprep.subr.mxu0 0.0
    %440 = vmatpush1.msra.mxu0 0.0
    %441 = vmatprep.subr.mxu0 0.0
    %442 = vmatpush1.msra.mxu0 0.0
    %443 = vmatprep.subr.mxu0 0.0
    %444 = vmatpush1.msra.mxu0 0.0
    %445 = vmatprep.subr.mxu0 0.0
    %446 = vmatpush1.msra.mxu0 0.0
    %447 = vmatprep.subr.mxu0 0.0
    %448 = vmatpush1.msra.mxu0 0.0
    %449 = vmatprep.subr.mxu0 0.0
    %450 = vmatpush1.msra.mxu0 0.0
    %451 = vmatprep.subr.mxu0 0.0
    %452 = vmatpush1.msra.mxu0 0.0
    %453 = vmatprep.subr.mxu0 0.0
    %454 = vmatpush1.msra.mxu0 0.0
    %455 = vmatprep.subr.mxu0 0.0
    %456 = vmatpush1.msra.mxu0 0.0
    %457 = vmatprep.subr.mxu0 0.0
    %458 = vmatpush1.msra.mxu0 0.0
    %459 = vmatprep.subr.mxu0 0.0
    %460 = vmatpush1.msra.mxu0 0.0
    %461 = vmatprep.subr.mxu0 0.0
    %462 = vmatpush1.msra.mxu0 0.0
    %463 = vmatprep.subr.mxu0 0.0
    %464 = vmatpush1.msra.mxu0 0.0
    %465 = vmatprep.subr.mxu0 0.0
    %466 = vmatpush1.msra.mxu0 0.0
    %467 = vmatprep.subr.mxu0 0.0
    %468 = vmatpush1.msra.mxu0 0.0
    %469 = vmatprep.subr.mxu0 0.0
    %470 = vmatpush1.msra.mxu0 0.0
    %471 = vmatprep.mubr.f32.mxu0 0.0
    %472 = vmatmul.mubr.f32.gmra.mrb[0].mxu0 %v322
    %v473 = vpop.f32.mrb[0].mxu0
    %v474 = vadd.f32 %v316, %v473
    %v475 = vpop.f32.mrb[0].mxu0
    %v476 = vadd.f32 %v318, %v475
    %477 = vdwg.mxu0
    %v479 = vlaneseq
    %v480 = vshrl.u32 %v479, 7
    %v481 = vsub.s32 0, %v480
    %v482 = vrot.slane %v160, %v481
    %v483 = vlaneseq
    %v484 = vshrl.u32 %v483, 7
    %v485 = vsub.s32 1, %v484
    %v486 = vrot.slane %v160, %v485
    %v487 = vlaneseq
    %v488 = vshrl.u32 %v487, 7
    %v489 = vsub.s32 2, %v488
    %v490 = vrot.slane %v160, %v489
    %v491 = vlaneseq
    %v492 = vshrl.u32 %v491, 7
    %v493 = vsub.s32 3, %v492
    %v494 = vrot.slane %v160, %v493
    %v499 = vadd.f32 %v403, %v482
    %v500 = vadd.f32 %v405, %v486
    %v501 = vadd.f32 %v474, %v490
    %v502 = vadd.f32 %v476, %v494
    %v503 = vtanh.pop %v499
    %v504 = vtanh.pop %v500
    %v505 = vmul.f32 %v501, %v141
    %v506 = vadd.f32 %v505, %v502
    %v507 = vxor.u32 %v506, 2147483648
    %v508 = vmul.f32 %v507, 1.442695
    %v509 = vpow.pop %v508
    %v510 = vadd.f32 %v509, 1.0
    %v511 = vrcp.pop %v510
    %v512 = vmul.f32 1.0, %v511
    %v513 = vsub.f32 1.0, %v512
    %v514 = vmul.f32 %v503, %v513
    %v515 = vmul.f32 %v512, %v504
    %v516 = vadd.f32 %v514, %v515
    %vm517 = vcmask 74752
    %518 = vst.msk [vmem:[#allocation14] sm:$0x3] %vm517, %v516
    %v519 = vld [vmem:[#allocation8] sm:$0xff]
    %v520 = vld [vmem:[#allocation8 + $0x8] sm:$0xff]
    %v521 = vld [vmem:[#allocation8 + $0x10] sm:$0xff]
    %v522 = vld [vmem:[#allocation8 + $0x18] sm:$0xff]
    %v523 = vld [vmem:[#allocation8 + $0x20] sm:$0xff]
    %v524 = vld [vmem:[#allocation8 + $0x28] sm:$0xff]
    %v525 = vld [vmem:[#allocation8 + $0x30] sm:$0xff]
    %v526 = vld [vmem:[#allocation8 + $0x38] sm:$0xff]
    %v527 = vld [vmem:[#allocation8 + $0x40] sm:$0xff]
    %v528 = vld [vmem:[#allocation8 + $0x48] sm:$0xff]
    %v529 = vld [vmem:[#allocation8 + $0x50] sm:$0xff]
    %v530 = vld [vmem:[#allocation8 + $0x58] sm:$0xff]
    %v531 = vld [vmem:[#allocation8 + $0x60] sm:$0xff]
    %v532 = vld [vmem:[#allocation8 + $0x68] sm:$0xff]
    %v533 = vld [vmem:[#allocation8 + $0x70] sm:$0xff]
    %v534 = vld [vmem:[#allocation8 + $0x78] sm:$0xff]
    %v535 = vld [vmem:[#allocation8 + $0x80] sm:$0xff]
    %v536 = vld [vmem:[#allocation8 + $0x88] sm:$0xff]
    %v537 = vld [vmem:[#allocation8 + $0x90] sm:$0xff]
    %v538 = vld [vmem:[#allocation8 + $0x98] sm:$0xff]
    %v539 = vld [vmem:[#allocation8 + $0xa0] sm:$0xff]
    %v540 = vld [vmem:[#allocation8 + $0xa8] sm:$0xff]
    %v541 = vld [vmem:[#allocation8 + $0xb0] sm:$0xff]
    %v542 = vld [vmem:[#allocation8 + $0xb8] sm:$0xff]
    %v543 = vld [vmem:[#allocation8 + $0xc0] sm:$0xff]
    %v544 = vld [vmem:[#allocation8 + $0xc8] sm:$0xff]
    %v545 = vld [vmem:[#allocation8 + $0xd0] sm:$0xff]
    %v546 = vld [vmem:[#allocation8 + $0xd8] sm:$0xff]
    %v547 = vld [vmem:[#allocation8 + $0xe0] sm:$0xff]
    %v548 = vld [vmem:[#allocation8 + $0xe8] sm:$0xff]
    %v549 = vld [vmem:[#allocation8 + $0xf0] sm:$0xff]
    %v550 = vld [vmem:[#allocation8 + $0xf8] sm:$0xff]
    %v551 = vld [vmem:[#allocation8 + $0x100] sm:$0xff]
    %v552 = vld [vmem:[#allocation8 + $0x108] sm:$0xff]
    %v553 = vld [vmem:[#allocation8 + $0x110] sm:$0xff]
    %v554 = vld [vmem:[#allocation8 + $0x118] sm:$0xff]
    %v555 = vld [vmem:[#allocation8 + $0x120] sm:$0xff]
    %v556 = vld [vmem:[#allocation8 + $0x128] sm:$0xff]
    %v557 = vld [vmem:[#allocation8 + $0x130] sm:$0xff]
    %v558 = vld [vmem:[#allocation8 + $0x138] sm:$0xff]
    %v559 = vld [vmem:[#allocation8 + $0x140] sm:$0xff]
    %v560 = vld [vmem:[#allocation8 + $0x148] sm:$0xff]
    %v561 = vld [vmem:[#allocation8 + $0x150] sm:$0xff]
    %v562 = vld [vmem:[#allocation8 + $0x158] sm:$0xff]
    %v563 = vld [vmem:[#allocation8 + $0x160] sm:$0xff]
    %v564 = vld [vmem:[#allocation8 + $0x168] sm:$0xff]
    %v565 = vld [vmem:[#allocation8 + $0x170] sm:$0xff]
    %v566 = vld [vmem:[#allocation8 + $0x178] sm:$0xff]
    %v567 = vld [vmem:[#allocation8 + $0x180] sm:$0xff]
    %v568 = vld [vmem:[#allocation8 + $0x188] sm:$0xff]
    %v569 = vld [vmem:[#allocation8 + $0x190] sm:$0xff]
    %v570 = vld [vmem:[#allocation8 + $0x198] sm:$0xff]
    %v571 = vld [vmem:[#allocation8 + $0x1a0] sm:$0xff]
    %v572 = vld [vmem:[#allocation8 + $0x1a8] sm:$0xff]
    %v573 = vld [vmem:[#allocation8 + $0x1b0] sm:$0xff]
    %v574 = vld [vmem:[#allocation8 + $0x1b8] sm:$0xff]
    %v575 = vld [vmem:[#allocation8 + $0x1c0] sm:$0xff]
    %v576 = vld [vmem:[#allocation8 + $0x1c8] sm:$0xff]
    %v577 = vld [vmem:[#allocation8 + $0x1d0] sm:$0xff]
    %v578 = vld [vmem:[#allocation8 + $0x1d8] sm:$0xff]
    %v579 = vld [vmem:[#allocation8 + $0x1e0] sm:$0xff]
    %v580 = vld [vmem:[#allocation8 + $0x1e8] sm:$0xff]
    %v581 = vld [vmem:[#allocation8 + $0x1f0] sm:$0xff]
    %v582 = vld [vmem:[#allocation8 + $0x1f8] sm:$0xff]
    %v583 = vld [vmem:[#allocation10] sm:$0xff]
    %v584 = vld [vmem:[#allocation10 + $0x8] sm:$0xff]
    %v585 = vld [vmem:[#allocation10 + $0x10] sm:$0xff]
    %v586 = vld [vmem:[#allocation10 + $0x18] sm:$0xff]
    %v587 = vld [vmem:[#allocation10 + $0x20] sm:$0xff]
    %v588 = vld [vmem:[#allocation10 + $0x28] sm:$0xff]
    %v589 = vld [vmem:[#allocation10 + $0x30] sm:$0xff]
    %v590 = vld [vmem:[#allocation10 + $0x38] sm:$0xff]
    %v591 = vld [vmem:[#allocation10 + $0x40] sm:$0x3f]
    %v592 = vld [vmem:[#allocation10 + $0x48] sm:$0x3f]
    %v593 = vld [vmem:[#allocation10 + $0x50] sm:$0x3f]
    %v594 = vld [vmem:[#allocation10 + $0x58] sm:$0x3f]
    %v595 = vld [vmem:[%s8] sm:$0xf]
    %v597 = vsel %vm165, %v591, 0
    %v600 = vsel %vm165, %v592, 0
    %v603 = vsel %vm165, %v593, 0
    %v606 = vsel %vm165, %v594, 0
    %608 = vmatprep.subr.mxu0 %v584
    %609 = vmatpush1.msra.mxu0 %v583
    %610 = vmatprep.subr.mxu0 %v588
    %611 = vmatpush1.msra.mxu0 %v587
    %612 = vmatprep.subr.mxu0 %v600
    %613 = vmatpush1.msra.mxu0 %v597
    %614 = vmatprep.subr.mxu0 0.0
    %615 = vmatpush1.msra.mxu0 0.0
    %616 = vmatprep.subr.mxu0 0.0
    %617 = vmatpush1.msra.mxu0 0.0
    %618 = vmatprep.subr.mxu0 0.0
    %619 = vmatpush1.msra.mxu0 0.0
    %620 = vmatprep.subr.mxu0 0.0
    %621 = vmatpush1.msra.mxu0 0.0
    %622 = vmatprep.subr.mxu0 0.0
    %623 = vmatpush1.msra.mxu0 0.0
    %624 = vmatprep.subr.mxu0 0.0
    %625 = vmatpush1.msra.mxu0 0.0
    %626 = vmatprep.subr.mxu0 0.0
    %627 = vmatpush1.msra.mxu0 0.0
    %628 = vmatprep.subr.mxu0 0.0
    %629 = vmatpush1.msra.mxu0 0.0
    %630 = vmatprep.subr.mxu0 0.0
    %631 = vmatpush1.msra.mxu0 0.0
    %632 = vmatprep.subr.mxu0 0.0
    %633 = vmatpush1.msra.mxu0 0.0
    %634 = vmatprep.subr.mxu0 0.0
    %635 = vmatpush1.msra.mxu0 0.0
    %636 = vmatprep.subr.mxu0 0.0
    %637 = vmatpush1.msra.mxu0 0.0
    %638 = vmatprep.subr.mxu0 0.0
    %639 = vmatpush1.msra.mxu0 0.0
    %640 = vmatprep.subr.mxu0 0.0
    %641 = vmatpush1.msra.mxu0 0.0
    %642 = vmatprep.subr.mxu0 0.0
    %643 = vmatpush1.msra.mxu0 0.0
    %644 = vmatprep.subr.mxu0 0.0
    %645 = vmatpush1.msra.mxu0 0.0
    %646 = vmatprep.subr.mxu0 0.0
    %647 = vmatpush1.msra.mxu0 0.0
    %648 = vmatprep.subr.mxu0 0.0
    %649 = vmatpush1.msra.mxu0 0.0
    %650 = vmatprep.subr.mxu0 0.0
    %651 = vmatpush1.msra.mxu0 0.0
    %652 = vmatprep.subr.mxu0 0.0
    %653 = vmatpush1.msra.mxu0 0.0
    %654 = vmatprep.subr.mxu0 0.0
    %655 = vmatpush1.msra.mxu0 0.0
    %656 = vmatprep.subr.mxu0 0.0
    %657 = vmatpush1.msra.mxu0 0.0
    %658 = vmatprep.subr.mxu0 0.0
    %659 = vmatpush1.msra.mxu0 0.0
    %660 = vmatprep.subr.mxu0 0.0
    %661 = vmatpush1.msra.mxu0 0.0
    %662 = vmatprep.subr.mxu0 0.0
    %663 = vmatpush1.msra.mxu0 0.0
    %664 = vmatprep.subr.mxu0 0.0
    %665 = vmatpush1.msra.mxu0 0.0
    %666 = vmatprep.subr.mxu0 0.0
    %667 = vmatpush1.msra.mxu0 0.0
    %668 = vmatprep.subr.mxu0 0.0
    %669 = vmatpush1.msra.mxu0 0.0
    %670 = vmatprep.subr.mxu0 0.0
    %671 = vmatpush1.msra.mxu0 0.0
    %672 = vmatprep.mubr.f32.mxu0 0.0
    %673 = vmatmul.mubr.f32.gmra.mrb[0].mxu0 %v163
    %v674 = vpop.f32.mrb[0].mxu0
    %v675 = vadd.f32 0.0, %v674
    %v676 = vpop.f32.mrb[0].mxu0
    %v677 = vadd.f32 0.0, %v676
    %678 = vdwg.mxu0
    %679 = vmatprep.subr.mxu0 %v586
    %680 = vmatpush1.msra.mxu0 %v585
    %681 = vmatprep.subr.mxu0 %v590
    %682 = vmatpush1.msra.mxu0 %v589
    %683 = vmatprep.subr.mxu0 %v606
    %684 = vmatpush1.msra.mxu0 %v603
    %685 = vmatprep.subr.mxu0 0.0
    %686 = vmatpush1.msra.mxu0 0.0
    %687 = vmatprep.subr.mxu0 0.0
    %688 = vmatpush1.msra.mxu0 0.0
    %689 = vmatprep.subr.mxu0 0.0
    %690 = vmatpush1.msra.mxu0 0.0
    %691 = vmatprep.subr.mxu0 0.0
    %692 = vmatpush1.msra.mxu0 0.0
    %693 = vmatprep.subr.mxu0 0.0
    %694 = vmatpush1.msra.mxu0 0.0
    %695 = vmatprep.subr.mxu0 0.0
    %696 = vmatpush1.msra.mxu0 0.0
    %697 = vmatprep.subr.mxu0 0.0
    %698 = vmatpush1.msra.mxu0 0.0
    %699 = vmatprep.subr.mxu0 0.0
    %700 = vmatpush1.msra.mxu0 0.0
    %701 = vmatprep.subr.mxu0 0.0
    %702 = vmatpush1.msra.mxu0 0.0
    %703 = vmatprep.subr.mxu0 0.0
    %704 = vmatpush1.msra.mxu0 0.0
    %705 = vmatprep.subr.mxu0 0.0
    %706 = vmatpush1.msra.mxu0 0.0
    %707 = vmatprep.subr.mxu0 0.0
    %708 = vmatpush1.msra.mxu0 0.0
    %709 = vmatprep.subr.mxu0 0.0
    %710 = vmatpush1.msra.mxu0 0.0
    %711 = vmatprep.subr.mxu0 0.0
    %712 = vmatpush1.msra.mxu0 0.0
    %713 = vmatprep.subr.mxu0 0.0
    %714 = vmatpush1.msra.mxu0 0.0
    %715 = vmatprep.subr.mxu0 0.0
    %716 = vmatpush1.msra.mxu0 0.0
    %717 = vmatprep.subr.mxu0 0.0
    %718 = vmatpush1.msra.mxu0 0.0
    %719 = vmatprep.subr.mxu0 0.0
    %720 = vmatpush1.msra.mxu0 0.0
    %721 = vmatprep.subr.mxu0 0.0
    %722 = vmatpush1.msra.mxu0 0.0
    %723 = vmatprep.subr.mxu0 0.0
    %724 = vmatpush1.msra.mxu0 0.0
    %725 = vmatprep.subr.mxu0 0.0
    %726 = vmatpush1.msra.mxu0 0.0
    %727 = vmatprep.subr.mxu0 0.0
    %728 = vmatpush1.msra.mxu0 0.0
    %729 = vmatprep.subr.mxu0 0.0
    %730 = vmatpush1.msra.mxu0 0.0
    %731 = vmatprep.subr.mxu0 0.0
    %732 = vmatpush1.msra.mxu0 0.0
    %733 = vmatprep.subr.mxu0 0.0
    %734 = vmatpush1.msra.mxu0 0.0
    %735 = vmatprep.subr.mxu0 0.0
    %736 = vmatpush1.msra.mxu0 0.0
    %737 = vmatprep.subr.mxu0 0.0
    %738 = vmatpush1.msra.mxu0 0.0
    %739 = vmatprep.subr.mxu0 0.0
    %740 = vmatpush1.msra.mxu0 0.0
    %741 = vmatprep.subr.mxu0 0.0
    %742 = vmatpush1.msra.mxu0 0.0
    %743 = vmatprep.mubr.f32.mxu0 0.0
    %744 = vmatmul.mubr.f32.gmra.mrb[0].mxu0 %v163
    %v745 = vpop.f32.mrb[0].mxu0
    %v746 = vadd.f32 0.0, %v745
    %v747 = vpop.f32.mrb[0].mxu0
    %v748 = vadd.f32 0.0, %v747
    %749 = vdwg.mxu0
    %750 = vmatprep.subr.mxu0 %v520
    %751 = vmatpush1.msra.mxu0 %v519
    %752 = vmatprep.subr.mxu0 %v524
    %753 = vmatpush1.msra.mxu0 %v523
    %754 = vmatprep.subr.mxu0 %v528
    %755 = vmatpush1.msra.mxu0 %v527
    %756 = vmatprep.subr.mxu0 %v532
    %757 = vmatpush1.msra.mxu0 %v531
    %758 = vmatprep.subr.mxu0 %v536
    %759 = vmatpush1.msra.mxu0 %v535
    %760 = vmatprep.subr.mxu0 %v540
    %761 = vmatpush1.msra.mxu0 %v539
    %762 = vmatprep.subr.mxu0 %v544
    %763 = vmatpush1.msra.mxu0 %v543
    %764 = vmatprep.subr.mxu0 %v548
    %765 = vmatpush1.msra.mxu0 %v547
    %766 = vmatprep.subr.mxu0 %v552
    %767 = vmatpush1.msra.mxu0 %v551
    %768 = vmatprep.subr.mxu0 %v556
    %769 = vmatpush1.msra.mxu0 %v555
    %770 = vmatprep.subr.mxu0 %v560
    %771 = vmatpush1.msra.mxu0 %v559
    %772 = vmatprep.subr.mxu0 %v564
    %773 = vmatpush1.msra.mxu0 %v563
    %774 = vmatprep.subr.mxu0 %v568
    %775 = vmatpush1.msra.mxu0 %v567
    %776 = vmatprep.subr.mxu0 %v572
    %777 = vmatpush1.msra.mxu0 %v571
    %778 = vmatprep.subr.mxu0 %v576
    %779 = vmatpush1.msra.mxu0 %v575
    %780 = vmatprep.subr.mxu0 %v580
    %781 = vmatpush1.msra.mxu0 %v579
    %782 = vmatprep.subr.mxu0 0.0
    %783 = vmatpush1.msra.mxu0 0.0
    %784 = vmatprep.subr.mxu0 0.0
    %785 = vmatpush1.msra.mxu0 0.0
    %786 = vmatprep.subr.mxu0 0.0
    %787 = vmatpush1.msra.mxu0 0.0
    %788 = vmatprep.subr.mxu0 0.0
    %789 = vmatpush1.msra.mxu0 0.0
    %790 = vmatprep.subr.mxu0 0.0
    %791 = vmatpush1.msra.mxu0 0.0
    %792 = vmatprep.subr.mxu0 0.0
    %793 = vmatpush1.msra.mxu0 0.0
    %794 = vmatprep.subr.mxu0 0.0
    %795 = vmatpush1.msra.mxu0 0.0
    %796 = vmatprep.subr.mxu0 0.0
    %797 = vmatpush1.msra.mxu0 0.0
    %798 = vmatprep.subr.mxu0 0.0
    %799 = vmatpush1.msra.mxu0 0.0
    %800 = vmatprep.subr.mxu0 0.0
    %801 = vmatpush1.msra.mxu0 0.0
    %802 = vmatprep.subr.mxu0 0.0
    %803 = vmatpush1.msra.mxu0 0.0
    %804 = vmatprep.subr.mxu0 0.0
    %805 = vmatpush1.msra.mxu0 0.0
    %806 = vmatprep.subr.mxu0 0.0
    %807 = vmatpush1.msra.mxu0 0.0
    %808 = vmatprep.subr.mxu0 0.0
    %809 = vmatpush1.msra.mxu0 0.0
    %810 = vmatprep.subr.mxu0 0.0
    %811 = vmatpush1.msra.mxu0 0.0
    %812 = vmatprep.subr.mxu0 0.0
    %813 = vmatpush1.msra.mxu0 0.0
    %814 = vmatprep.mubr.f32.mxu0 0.0
    %815 = vmatmul.mubr.f32.gmra.mrb[0].mxu0 %v516
    %v816 = vpop.f32.mrb[0].mxu0
    %v817 = vadd.f32 %v675, %v816
    %v818 = vpop.f32.mrb[0].mxu0
    %v819 = vadd.f32 %v677, %v818
    %820 = vdwg.mxu0
    %821 = vmatprep.subr.mxu0 %v522
    %822 = vmatpush1.msra.mxu0 %v521
    %823 = vmatprep.subr.mxu0 %v526
    %824 = vmatpush1.msra.mxu0 %v525
    %825 = vmatprep.subr.mxu0 %v530
    %826 = vmatpush1.msra.mxu0 %v529
    %827 = vmatprep.subr.mxu0 %v534
    %828 = vmatpush1.msra.mxu0 %v533
    %829 = vmatprep.subr.mxu0 %v538
    %830 = vmatpush1.msra.mxu0 %v537
    %831 = vmatprep.subr.mxu0 %v542
    %832 = vmatpush1.msra.mxu0 %v541
    %833 = vmatprep.subr.mxu0 %v546
    %834 = vmatpush1.msra.mxu0 %v545
    %835 = vmatprep.subr.mxu0 %v550
    %836 = vmatpush1.msra.mxu0 %v549
    %837 = vmatprep.subr.mxu0 %v554
    %838 = vmatpush1.msra.mxu0 %v553
    %839 = vmatprep.subr.mxu0 %v558
    %840 = vmatpush1.msra.mxu0 %v557
    %841 = vmatprep.subr.mxu0 %v562
    %842 = vmatpush1.msra.mxu0 %v561
    %843 = vmatprep.subr.mxu0 %v566
    %844 = vmatpush1.msra.mxu0 %v565
    %845 = vmatprep.subr.mxu0 %v570
    %846 = vmatpush1.msra.mxu0 %v569
    %847 = vmatprep.subr.mxu0 %v574
    %848 = vmatpush1.msra.mxu0 %v573
    %849 = vmatprep.subr.mxu0 %v578
    %850 = vmatpush1.msra.mxu0 %v577
    %851 = vmatprep.subr.mxu0 %v582
    %852 = vmatpush1.msra.mxu0 %v581
    %853 = vmatprep.subr.mxu0 0.0
    %854 = vmatpush1.msra.mxu0 0.0
    %855 = vmatprep.subr.mxu0 0.0
    %856 = vmatpush1.msra.mxu0 0.0
    %857 = vmatprep.subr.mxu0 0.0
    %858 = vmatpush1.msra.mxu0 0.0
    %859 = vmatprep.subr.mxu0 0.0
    %860 = vmatpush1.msra.mxu0 0.0
    %861 = vmatprep.subr.mxu0 0.0
    %862 = vmatpush1.msra.mxu0 0.0
    %863 = vmatprep.subr.mxu0 0.0
    %864 = vmatpush1.msra.mxu0 0.0
    %865 = vmatprep.subr.mxu0 0.0
    %866 = vmatpush1.msra.mxu0 0.0
    %867 = vmatprep.subr.mxu0 0.0
    %868 = vmatpush1.msra.mxu0 0.0
    %869 = vmatprep.subr.mxu0 0.0
    %870 = vmatpush1.msra.mxu0 0.0
    %871 = vmatprep.subr.mxu0 0.0
    %872 = vmatpush1.msra.mxu0 0.0
    %873 = vmatprep.subr.mxu0 0.0
    %874 = vmatpush1.msra.mxu0 0.0
    %875 = vmatprep.subr.mxu0 0.0
    %876 = vmatpush1.msra.mxu0 0.0
    %877 = vmatprep.subr.mxu0 0.0
    %878 = vmatpush1.msra.mxu0 0.0
    %879 = vmatprep.subr.mxu0 0.0
    %880 = vmatpush1.msra.mxu0 0.0
    %881 = vmatprep.subr.mxu0 0.0
    %882 = vmatpush1.msra.mxu0 0.0
    %883 = vmatprep.subr.mxu0 0.0
    %884 = vmatpush1.msra.mxu0 0.0
    %885 = vmatprep.mubr.f32.mxu0 0.0
    %886 = vmatmul.mubr.f32.gmra.mrb[0].mxu0 %v516
    %v887 = vpop.f32.mrb[0].mxu0
    %v888 = vadd.f32 %v746, %v887
    %v889 = vpop.f32.mrb[0].mxu0
    %v890 = vadd.f32 %v748, %v889
    %891 = vdwg.mxu0
    %v893 = vlaneseq
    %v894 = vshrl.u32 %v893, 7
    %v895 = vsub.s32 0, %v894
    %v896 = vrot.slane %v595, %v895
    %v897 = vlaneseq
    %v898 = vshrl.u32 %v897, 7
    %v899 = vsub.s32 1, %v898
    %v900 = vrot.slane %v595, %v899
    %v901 = vlaneseq
    %v902 = vshrl.u32 %v901, 7
    %v903 = vsub.s32 2, %v902
    %v904 = vrot.slane %v595, %v903
    %v905 = vlaneseq
    %v906 = vshrl.u32 %v905, 7
    %v907 = vsub.s32 3, %v906
    %v908 = vrot.slane %v595, %v907
    %v913 = vadd.f32 %v817, %v896
    %v914 = vadd.f32 %v819, %v900
    %v915 = vadd.f32 %v888, %v904
    %v916 = vadd.f32 %v890, %v908
    %v917 = vtanh.pop %v913
    %v918 = vtanh.pop %v914
    %v919 = vmul.f32 %v915, %v141
    %v920 = vadd.f32 %v919, %v916
    %v921 = vxor.u32 %v920, 2147483648
    %v922 = vmul.f32 %v921, 1.442695
    %v923 = vpow.pop %v922
    %v924 = vadd.f32 %v923, 1.0
    %v925 = vrcp.pop %v924
    %v926 = vmul.f32 1.0, %v925
    %v927 = vsub.f32 1.0, %v926
    %v928 = vmul.f32 %v917, %v927
    %v929 = vmul.f32 %v926, %v918
    %v930 = vadd.f32 %v928, %v929
    %932 = vrot.lane.b32.xlu0 %v930, 10
    %v933 = vpop.permute.xlu0 %932
    %vm935 = vcmask 140368
    %936 = vst.msk [vmem:[#allocation14] sm:$0x3] %vm935, %v933
    %v937 = vld [vmem:[#allocation11] sm:$0xff]
    %v938 = vld [vmem:[#allocation11 + $0x8] sm:$0xff]
    %v939 = vld [vmem:[#allocation11 + $0x10] sm:$0xff]
    %v940 = vld [vmem:[#allocation11 + $0x18] sm:$0xff]
    %v941 = vld [vmem:[#allocation11 + $0x20] sm:$0xff]
    %v942 = vld [vmem:[#allocation11 + $0x28] sm:$0xff]
    %v943 = vld [vmem:[#allocation11 + $0x30] sm:$0xff]
    %v944 = vld [vmem:[#allocation11 + $0x38] sm:$0xff]
    %v945 = vld [vmem:[#allocation11 + $0x40] sm:$0xff]
    %v946 = vld [vmem:[#allocation11 + $0x48] sm:$0xff]
    %v947 = vld [vmem:[#allocation11 + $0x50] sm:$0xff]
    %v948 = vld [vmem:[#allocation11 + $0x58] sm:$0xff]
    %v949 = vld [vmem:[#allocation11 + $0x60] sm:$0xff]
    %v950 = vld [vmem:[#allocation11 + $0x68] sm:$0xff]
    %v951 = vld [vmem:[#allocation11 + $0x70] sm:$0xff]
    %v952 = vld [vmem:[#allocation11 + $0x78] sm:$0xff]
    %v953 = vld [vmem:[#allocation11 + $0x80] sm:$0xff]
    %v954 = vld [vmem:[#allocation11 + $0x88] sm:$0xff]
    %v955 = vld [vmem:[#allocation11 + $0x90] sm:$0xff]
    %v956 = vld [vmem:[#allocation11 + $0x98] sm:$0xff]
    %v957 = vld [vmem:[#allocation11 + $0xa0] sm:$0xff]
    %v958 = vld [vmem:[#allocation11 + $0xa8] sm:$0xff]
    %v959 = vld [vmem:[#allocation11 + $0xb0] sm:$0xff]
    %v960 = vld [vmem:[#allocation11 + $0xb8] sm:$0xff]
    %v961 = vld [vmem:[#allocation11 + $0xc0] sm:$0xff]
    %v962 = vld [vmem:[#allocation11 + $0xc8] sm:$0xff]
    %v963 = vld [vmem:[#allocation11 + $0xd0] sm:$0xff]
    %v964 = vld [vmem:[#allocation11 + $0xd8] sm:$0xff]
    %v965 = vld [vmem:[#allocation11 + $0xe0] sm:$0xff]
    %v966 = vld [vmem:[#allocation11 + $0xe8] sm:$0xff]
    %v967 = vld [vmem:[#allocation11 + $0xf0] sm:$0xff]
    %v968 = vld [vmem:[#allocation11 + $0xf8] sm:$0xff]
    %v969 = vld [vmem:[#allocation11 + $0x100] sm:$0xff]
    %v970 = vld [vmem:[#allocation11 + $0x108] sm:$0xff]
    %v971 = vld [vmem:[#allocation11 + $0x110] sm:$0xff]
    %v972 = vld [vmem:[#allocation11 + $0x118] sm:$0xff]
    %v973 = vld [vmem:[#allocation11 + $0x120] sm:$0xff]
    %v974 = vld [vmem:[#allocation11 + $0x128] sm:$0xff]
    %v975 = vld [vmem:[#allocation11 + $0x130] sm:$0xff]
    %v976 = vld [vmem:[#allocation11 + $0x138] sm:$0xff]
    %v977 = vld [vmem:[#allocation11 + $0x140] sm:$0xff]
    %v978 = vld [vmem:[#allocation11 + $0x148] sm:$0xff]
    %v979 = vld [vmem:[#allocation11 + $0x150] sm:$0xff]
    %v980 = vld [vmem:[#allocation11 + $0x158] sm:$0xff]
    %v981 = vld [vmem:[#allocation11 + $0x160] sm:$0xff]
    %v982 = vld [vmem:[#allocation11 + $0x168] sm:$0xff]
    %v983 = vld [vmem:[#allocation11 + $0x170] sm:$0xff]
    %v984 = vld [vmem:[#allocation11 + $0x178] sm:$0xff]
    %v985 = vld [vmem:[#allocation11 + $0x180] sm:$0xff]
    %v986 = vld [vmem:[#allocation11 + $0x188] sm:$0xff]
    %v987 = vld [vmem:[#allocation11 + $0x190] sm:$0xff]
    %v988 = vld [vmem:[#allocation11 + $0x198] sm:$0xff]
    %v989 = vld [vmem:[#allocation11 + $0x1a0] sm:$0xff]
    %v990 = vld [vmem:[#allocation11 + $0x1a8] sm:$0xff]
    %v991 = vld [vmem:[#allocation11 + $0x1b0] sm:$0xff]
    %v992 = vld [vmem:[#allocation11 + $0x1b8] sm:$0xff]
    %v993 = vld [vmem:[#allocation11 + $0x1c0] sm:$0xff]
    %v994 = vld [vmem:[#allocation11 + $0x1c8] sm:$0xff]
    %v995 = vld [vmem:[#allocation11 + $0x1d0] sm:$0xff]
    %v996 = vld [vmem:[#allocation11 + $0x1d8] sm:$0xff]
    %v997 = vld [vmem:[#allocation11 + $0x1e0] sm:$0xff]
    %v998 = vld [vmem:[#allocation11 + $0x1e8] sm:$0xff]
    %v999 = vld [vmem:[#allocation11 + $0x1f0] sm:$0xff]
    %v1000 = vld [vmem:[#allocation11 + $0x1f8] sm:$0xff]
    %v1001 = vld [vmem:[#allocation13] sm:$0xff]
    %v1002 = vld [vmem:[#allocation13 + $0x8] sm:$0xff]
    %v1003 = vld [vmem:[#allocation13 + $0x10] sm:$0xff]
    %v1004 = vld [vmem:[#allocation13 + $0x18] sm:$0xff]
    %v1005 = vld [vmem:[#allocation13 + $0x20] sm:$0xff]
    %v1006 = vld [vmem:[#allocation13 + $0x28] sm:$0xff]
    %v1007 = vld [vmem:[#allocation13 + $0x30] sm:$0xff]
    %v1008 = vld [vmem:[#allocation13 + $0x38] sm:$0xff]
    %v1009 = vld [vmem:[#allocation13 + $0x40] sm:$0x3f]
    %v1010 = vld [vmem:[#allocation13 + $0x48] sm:$0x3f]
    %v1011 = vld [vmem:[#allocation13 + $0x50] sm:$0x3f]
    %v1012 = vld [vmem:[#allocation13 + $0x58] sm:$0x3f]
    %v1013 = vld [vmem:[%s11] sm:$0xf]
    %v1015 = vsel %vm165, %v1009, 0
    %v1018 = vsel %vm165, %v1010, 0
    %v1021 = vsel %vm165, %v1011, 0
    %v1024 = vsel %vm165, %v1012, 0
    %1026 = vmatprep.subr.mxu0 %v1002
    %1027 = vmatpush1.msra.mxu0 %v1001
    %1028 = vmatprep.subr.mxu0 %v1006
    %1029 = vmatpush1.msra.mxu0 %v1005
    %1030 = vmatprep.subr.mxu0 %v1018
    %1031 = vmatpush1.msra.mxu0 %v1015
    %1032 = vmatprep.subr.mxu0 0.0
    %1033 = vmatpush1.msra.mxu0 0.0
    %1034 = vmatprep.subr.mxu0 0.0
    %1035 = vmatpush1.msra.mxu0 0.0
    %1036 = vmatprep.subr.mxu0 0.0
    %1037 = vmatpush1.msra.mxu0 0.0
    %1038 = vmatprep.subr.mxu0 0.0
    %1039 = vmatpush1.msra.mxu0 0.0
    %1040 = vmatprep.subr.mxu0 0.0
    %1041 = vmatpush1.msra.mxu0 0.0
    %1042 = vmatprep.subr.mxu0 0.0
    %1043 = vmatpush1.msra.mxu0 0.0
    %1044 = vmatprep.subr.mxu0 0.0
    %1045 = vmatpush1.msra.mxu0 0.0
    %1046 = vmatprep.subr.mxu0 0.0
    %1047 = vmatpush1.msra.mxu0 0.0
    %1048 = vmatprep.subr.mxu0 0.0
    %1049 = vmatpush1.msra.mxu0 0.0
    %1050 = vmatprep.subr.mxu0 0.0
    %1051 = vmatpush1.msra.mxu0 0.0
    %1052 = vmatprep.subr.mxu0 0.0
    %1053 = vmatpush1.msra.mxu0 0.0
    %1054 = vmatprep.subr.mxu0 0.0
    %1055 = vmatpush1.msra.mxu0 0.0
    %1056 = vmatprep.subr.mxu0 0.0
    %1057 = vmatpush1.msra.mxu0 0.0
    %1058 = vmatprep.subr.mxu0 0.0
    %1059 = vmatpush1.msra.mxu0 0.0
    %1060 = vmatprep.subr.mxu0 0.0
    %1061 = vmatpush1.msra.mxu0 0.0
    %1062 = vmatprep.subr.mxu0 0.0
    %1063 = vmatpush1.msra.mxu0 0.0
    %1064 = vmatprep.subr.mxu0 0.0
    %1065 = vmatpush1.msra.mxu0 0.0
    %1066 = vmatprep.subr.mxu0 0.0
    %1067 = vmatpush1.msra.mxu0 0.0
    %1068 = vmatprep.subr.mxu0 0.0
    %1069 = vmatpush1.msra.mxu0 0.0
    %1070 = vmatprep.subr.mxu0 0.0
    %1071 = vmatpush1.msra.mxu0 0.0
    %1072 = vmatprep.subr.mxu0 0.0
    %1073 = vmatpush1.msra.mxu0 0.0
    %1074 = vmatprep.subr.mxu0 0.0
    %1075 = vmatpush1.msra.mxu0 0.0
    %1076 = vmatprep.subr.mxu0 0.0
    %1077 = vmatpush1.msra.mxu0 0.0
    %1078 = vmatprep.subr.mxu0 0.0
    %1079 = vmatpush1.msra.mxu0 0.0
    %1080 = vmatprep.subr.mxu0 0.0
    %1081 = vmatpush1.msra.mxu0 0.0
    %1082 = vmatprep.subr.mxu0 0.0
    %1083 = vmatpush1.msra.mxu0 0.0
    %1084 = vmatprep.subr.mxu0 0.0
    %1085 = vmatpush1.msra.mxu0 0.0
    %1086 = vmatprep.subr.mxu0 0.0
    %1087 = vmatpush1.msra.mxu0 0.0
    %1088 = vmatprep.subr.mxu0 0.0
    %1089 = vmatpush1.msra.mxu0 0.0
    %1090 = vmatprep.mubr.f32.mxu0 0.0
    %1091 = vmatmul.mubr.f32.gmra.mrb[0].mxu0 %v163
    %v1092 = vpop.f32.mrb[0].mxu0
    %v1093 = vadd.f32 0.0, %v1092
    %v1094 = vpop.f32.mrb[0].mxu0
    %v1095 = vadd.f32 0.0, %v1094
    %1096 = vdwg.mxu0
    %1097 = vmatprep.subr.mxu0 %v1004
    %1098 = vmatpush1.msra.mxu0 %v1003
    %1099 = vmatprep.subr.mxu0 %v1008
    %1100 = vmatpush1.msra.mxu0 %v1007
    %1101 = vmatprep.subr.mxu0 %v1024
    %1102 = vmatpush1.msra.mxu0 %v1021
    %1103 = vmatprep.subr.mxu0 0.0
    %1104 = vmatpush1.msra.mxu0 0.0
    %1105 = vmatprep.subr.mxu0 0.0
    %1106 = vmatpush1.msra.mxu0 0.0
    %1107 = vmatprep.subr.mxu0 0.0
    %1108 = vmatpush1.msra.mxu0 0.0
    %1109 = vmatprep.subr.mxu0 0.0
    %1110 = vmatpush1.msra.mxu0 0.0
    %1111 = vmatprep.subr.mxu0 0.0
    %1112 = vmatpush1.msra.mxu0 0.0
    %1113 = vmatprep.subr.mxu0 0.0
    %1114 = vmatpush1.msra.mxu0 0.0
    %1115 = vmatprep.subr.mxu0 0.0
    %1116 = vmatpush1.msra.mxu0 0.0
    %1117 = vmatprep.subr.mxu0 0.0
    %1118 = vmatpush1.msra.mxu0 0.0
    %1119 = vmatprep.subr.mxu0 0.0
    %1120 = vmatpush1.msra.mxu0 0.0
    %1121 = vmatprep.subr.mxu0 0.0
    %1122 = vmatpush1.msra.mxu0 0.0
    %1123 = vmatprep.subr.mxu0 0.0
    %1124 = vmatpush1.msra.mxu0 0.0
    %1125 = vmatprep.subr.mxu0 0.0
    %1126 = vmatpush1.msra.mxu0 0.0
    %1127 = vmatprep.subr.mxu0 0.0
    %1128 = vmatpush1.msra.mxu0 0.0
    %1129 = vmatprep.subr.mxu0 0.0
    %1130 = vmatpush1.msra.mxu0 0.0
    %1131 = vmatprep.subr.mxu0 0.0
    %1132 = vmatpush1.msra.mxu0 0.0
    %1133 = vmatprep.subr.mxu0 0.0
    %1134 = vmatpush1.msra.mxu0 0.0
    %1135 = vmatprep.subr.mxu0 0.0
    %1136 = vmatpush1.msra.mxu0 0.0
    %1137 = vmatprep.subr.mxu0 0.0
    %1138 = vmatpush1.msra.mxu0 0.0
    %1139 = vmatprep.subr.mxu0 0.0
    %1140 = vmatpush1.msra.mxu0 0.0
    %1141 = vmatprep.subr.mxu0 0.0
    %1142 = vmatpush1.msra.mxu0 0.0
    %1143 = vmatprep.subr.mxu0 0.0
    %1144 = vmatpush1.msra.mxu0 0.0
    %1145 = vmatprep.subr.mxu0 0.0
    %1146 = vmatpush1.msra.mxu0 0.0
    %1147 = vmatprep.subr.mxu0 0.0
    %1148 = vmatpush1.msra.mxu0 0.0
    %1149 = vmatprep.subr.mxu0 0.0
    %1150 = vmatpush1.msra.mxu0 0.0
    %1151 = vmatprep.subr.mxu0 0.0
    %1152 = vmatpush1.msra.mxu0 0.0
    %1153 = vmatprep.subr.mxu0 0.0
    %1154 = vmatpush1.msra.mxu0 0.0
    %1155 = vmatprep.subr.mxu0 0.0
    %1156 = vmatpush1.msra.mxu0 0.0
    %1157 = vmatprep.subr.mxu0 0.0
    %1158 = vmatpush1.msra.mxu0 0.0
    %1159 = vmatprep.subr.mxu0 0.0
    %1160 = vmatpush1.msra.mxu0 0.0
    %1161 = vmatprep.mubr.f32.mxu0 0.0
    %1162 = vmatmul.mubr.f32.gmra.mrb[0].mxu0 %v163
    %v1163 = vpop.f32.mrb[0].mxu0
    %v1164 = vadd.f32 0.0, %v1163
    %v1165 = vpop.f32.mrb[0].mxu0
    %v1166 = vadd.f32 0.0, %v1165
    %1167 = vdwg.mxu0
    %1168 = vmatprep.subr.mxu0 %v938
    %1169 = vmatpush1.msra.mxu0 %v937
    %1170 = vmatprep.subr.mxu0 %v942
    %1171 = vmatpush1.msra.mxu0 %v941
    %1172 = vmatprep.subr.mxu0 %v946
    %1173 = vmatpush1.msra.mxu0 %v945
    %1174 = vmatprep.subr.mxu0 %v950
    %1175 = vmatpush1.msra.mxu0 %v949
    %1176 = vmatprep.subr.mxu0 %v954
    %1177 = vmatpush1.msra.mxu0 %v953
    %1178 = vmatprep.subr.mxu0 %v958
    %1179 = vmatpush1.msra.mxu0 %v957
    %1180 = vmatprep.subr.mxu0 %v962
    %1181 = vmatpush1.msra.mxu0 %v961
    %1182 = vmatprep.subr.mxu0 %v966
    %1183 = vmatpush1.msra.mxu0 %v965
    %1184 = vmatprep.subr.mxu0 %v970
    %1185 = vmatpush1.msra.mxu0 %v969
    %1186 = vmatprep.subr.mxu0 %v974
    %1187 = vmatpush1.msra.mxu0 %v973
    %1188 = vmatprep.subr.mxu0 %v978
    %1189 = vmatpush1.msra.mxu0 %v977
    %1190 = vmatprep.subr.mxu0 %v982
    %1191 = vmatpush1.msra.mxu0 %v981
    %1192 = vmatprep.subr.mxu0 %v986
    %1193 = vmatpush1.msra.mxu0 %v985
    %1194 = vmatprep.subr.mxu0 %v990
    %1195 = vmatpush1.msra.mxu0 %v989
    %1196 = vmatprep.subr.mxu0 %v994
    %1197 = vmatpush1.msra.mxu0 %v993
    %1198 = vmatprep.subr.mxu0 %v998
    %1199 = vmatpush1.msra.mxu0 %v997
    %1200 = vmatprep.subr.mxu0 0.0
    %1201 = vmatpush1.msra.mxu0 0.0
    %1202 = vmatprep.subr.mxu0 0.0
    %1203 = vmatpush1.msra.mxu0 0.0
    %1204 = vmatprep.subr.mxu0 0.0
    %1205 = vmatpush1.msra.mxu0 0.0
    %1206 = vmatprep.subr.mxu0 0.0
    %1207 = vmatpush1.msra.mxu0 0.0
    %1208 = vmatprep.subr.mxu0 0.0
    %1209 = vmatpush1.msra.mxu0 0.0
    %1210 = vmatprep.subr.mxu0 0.0
    %1211 = vmatpush1.msra.mxu0 0.0
    %1212 = vmatprep.subr.mxu0 0.0
    %1213 = vmatpush1.msra.mxu0 0.0
    %1214 = vmatprep.subr.mxu0 0.0
    %1215 = vmatpush1.msra.mxu0 0.0
    %1216 = vmatprep.subr.mxu0 0.0
    %1217 = vmatpush1.msra.mxu0 0.0
    %1218 = vmatprep.subr.mxu0 0.0
    %1219 = vmatpush1.msra.mxu0 0.0
    %1220 = vmatprep.subr.mxu0 0.0
    %1221 = vmatpush1.msra.mxu0 0.0
    %1222 = vmatprep.subr.mxu0 0.0
    %1223 = vmatpush1.msra.mxu0 0.0
    %1224 = vmatprep.subr.mxu0 0.0
    %1225 = vmatpush1.msra.mxu0 0.0
    %1226 = vmatprep.subr.mxu0 0.0
    %1227 = vmatpush1.msra.mxu0 0.0
    %1228 = vmatprep.subr.mxu0 0.0
    %1229 = vmatpush1.msra.mxu0 0.0
    %1230 = vmatprep.subr.mxu0 0.0
    %1231 = vmatpush1.msra.mxu0 0.0
    %1232 = vmatprep.mubr.f32.mxu0 0.0
    %1233 = vmatmul.mubr.f32.gmra.mrb[0].mxu0 %v930
    %v1234 = vpop.f32.mrb[0].mxu0
    %v1235 = vadd.f32 %v1093, %v1234
    %v1236 = vpop.f32.mrb[0].mxu0
    %v1237 = vadd.f32 %v1095, %v1236
    %1238 = vdwg.mxu0
    %1239 = vmatprep.subr.mxu0 %v940
    %1240 = vmatpush1.msra.mxu0 %v939
    %1241 = vmatprep.subr.mxu0 %v944
    %1242 = vmatpush1.msra.mxu0 %v943
    %1243 = vmatprep.subr.mxu0 %v948
    %1244 = vmatpush1.msra.mxu0 %v947
    %1245 = vmatprep.subr.mxu0 %v952
    %1246 = vmatpush1.msra.mxu0 %v951
    %1247 = vmatprep.subr.mxu0 %v956
    %1248 = vmatpush1.msra.mxu0 %v955
    %1249 = vmatprep.subr.mxu0 %v960
    %1250 = vmatpush1.msra.mxu0 %v959
    %1251 = vmatprep.subr.mxu0 %v964
    %1252 = vmatpush1.msra.mxu0 %v963
    %1253 = vmatprep.subr.mxu0 %v968
    %1254 = vmatpush1.msra.mxu0 %v967
    %1255 = vmatprep.subr.mxu0 %v972
    %1256 = vmatpush1.msra.mxu0 %v971
    %1257 = vmatprep.subr.mxu0 %v976
    %1258 = vmatpush1.msra.mxu0 %v975
    %1259 = vmatprep.subr.mxu0 %v980
    %1260 = vmatpush1.msra.mxu0 %v979
    %1261 = vmatprep.subr.mxu0 %v984
    %1262 = vmatpush1.msra.mxu0 %v983
    %1263 = vmatprep.subr.mxu0 %v988
    %1264 = vmatpush1.msra.mxu0 %v987
    %1265 = vmatprep.subr.mxu0 %v992
    %1266 = vmatpush1.msra.mxu0 %v991
    %1267 = vmatprep.subr.mxu0 %v996
    %1268 = vmatpush1.msra.mxu0 %v995
    %1269 = vmatprep.subr.mxu0 %v1000
    %1270 = vmatpush1.msra.mxu0 %v999
    %1271 = vmatprep.subr.mxu0 0.0
    %1272 = vmatpush1.msra.mxu0 0.0
    %1273 = vmatprep.subr.mxu0 0.0
    %1274 = vmatpush1.msra.mxu0 0.0
    %1275 = vmatprep.subr.mxu0 0.0
    %1276 = vmatpush1.msra.mxu0 0.0
    %1277 = vmatprep.subr.mxu0 0.0
    %1278 = vmatpush1.msra.mxu0 0.0
    %1279 = vmatprep.subr.mxu0 0.0
    %1280 = vmatpush1.msra.mxu0 0.0
    %1281 = vmatprep.subr.mxu0 0.0
    %1282 = vmatpush1.msra.mxu0 0.0
    %1283 = vmatprep.subr.mxu0 0.0
    %1284 = vmatpush1.msra.mxu0 0.0
    %1285 = vmatprep.subr.mxu0 0.0
    %1286 = vmatpush1.msra.mxu0 0.0
    %1287 = vmatprep.subr.mxu0 0.0
    %1288 = vmatpush1.msra.mxu0 0.0
    %1289 = vmatprep.subr.mxu0 0.0
    %1290 = vmatpush1.msra.mxu0 0.0
    %1291 = vmatprep.subr.mxu0 0.0
    %1292 = vmatpush1.msra.mxu0 0.0
    %1293 = vmatprep.subr.mxu0 0.0
    %1294 = vmatpush1.msra.mxu0 0.0
    %1295 = vmatprep.subr.mxu0 0.0
    %1296 = vmatpush1.msra.mxu0 0.0
    %1297 = vmatprep.subr.mxu0 0.0
    %1298 = vmatpush1.msra.mxu0 0.0
    %1299 = vmatprep.subr.mxu0 0.0
    %1300 = vmatpush1.msra.mxu0 0.0
    %1301 = vmatprep.subr.mxu0 0.0
    %1302 = vmatpush1.msra.mxu0 0.0
    %1303 = vmatprep.mubr.f32.mxu0 0.0
    %1304 = vmatmul.mubr.f32.gmra.mrb[0].mxu0 %v930
    %v1305 = vpop.f32.mrb[0].mxu0
    %v1306 = vadd.f32 %v1164, %v1305
    %v1307 = vpop.f32.mrb[0].mxu0
    %v1308 = vadd.f32 %v1166, %v1307
    %1309 = vdwg.mxu0
    %v1311 = vlaneseq
    %v1312 = vshrl.u32 %v1311, 7
    %v1313 = vsub.s32 0, %v1312
    %v1314 = vrot.slane %v1013, %v1313
    %v1315 = vlaneseq
    %v1316 = vshrl.u32 %v1315, 7
    %v1317 = vsub.s32 1, %v1316
    %v1318 = vrot.slane %v1013, %v1317
    %v1319 = vlaneseq
    %v1320 = vshrl.u32 %v1319, 7
    %v1321 = vsub.s32 2, %v1320
    %v1322 = vrot.slane %v1013, %v1321
    %v1323 = vlaneseq
    %v1324 = vshrl.u32 %v1323, 7
    %v1325 = vsub.s32 3, %v1324
    %v1326 = vrot.slane %v1013, %v1325
    %v1331 = vadd.f32 %v1235, %v1314
    %v1332 = vadd.f32 %v1237, %v1318
    %v1333 = vadd.f32 %v1306, %v1322
    %v1334 = vadd.f32 %v1308, %v1326
    %v1335 = vtanh.pop %v1331
    %v1336 = vtanh.pop %v1332
    %v1337 = vmul.f32 %v1333, %v141
    %v1338 = vadd.f32 %v1337, %v1334
    %v1339 = vxor.u32 %v1338, 2147483648
    %v1340 = vmul.f32 %v1339, 1.442695
    %v1341 = vpow.pop %v1340
    %v1342 = vadd.f32 %v1341, 1.0
    %v1343 = vrcp.pop %v1342
    %v1344 = vmul.f32 1.0, %v1343
    %v1345 = vsub.f32 1.0, %v1344
    %v1346 = vmul.f32 %v1335, %v1345
    %v1347 = vmul.f32 %v1344, %v1336
    %v1348 = vadd.f32 %v1346, %v1347
    %1350 = vrot.lane.b32.xlu0 %v1348, 18
    %v1351 = vpop.permute.xlu0 %1350
    %vm1353 = vcmask 173200
    %1354 = vst.msk [vmem:[#allocation14] sm:$0x3] %vm1353, %v1351
    %vm1355 = vcmask 25600
    %1356 = vst.msk [vmem:[#allocation15] sm:$0x3] %vm1355, %v1348
    // Predicated region
    $region78: #{tpu_custom_call.1} parent=1 // pred_check
      _
    $region79: #{tpu_custom_call.1} parent=1 // pred_check_branch
      %1358 = sbr.rel (0) target = $region81
    $region80: #{tpu_custom_call.1} parent=1 // pred_region
      %s1360 = ssub.s32 32, 32
      %1361 = vsyncadd [#allocation4], %s1360
      %s1363 = sshll.u32 [#allocation14], 4
      %s1364 = int_to_ptr.vmem [resolvable:$true] %s1363
      %1366 = dma.vmem_to_hbm [thread:$0]  %s1364, 32, %s12, [#allocation4]
    $region81: #{tpu_custom_call.1} parent=1 // pred_fallthru
      _
    // Predicated region
    $region82: #{tpu_custom_call.1} parent=1 // pred_check
      _
    $region83: #{tpu_custom_call.1} parent=1 // pred_check_branch
      %1368 = sbr.rel (0) target = $region85
    $region84: #{tpu_custom_call.1} parent=1 // pred_region
      %s1370 = ssub.s32 32, 32
      %1371 = vsyncadd [#allocation16], %s1370
      %s1373 = sshll.u32 [#allocation15], 4
      %s1374 = int_to_ptr.vmem [resolvable:$true] %s1373
      %1376 = dma.vmem_to_hbm [thread:$0]  %s1374, 32, %s13, [#allocation16]
    $region85: #{tpu_custom_call.1} parent=1 // pred_fallthru
      _
    // Predicated region
    $region86: #{tpu_custom_call.1} parent=1 // pred_check
      _
    $region87: #{tpu_custom_call.1} parent=1 // pred_check_branch
      %1378 = sbr.rel (0) target = $region89
    $region88: #{tpu_custom_call.1} parent=1 // pred_region
      %1379 = dma.done [#allocation4], 32
    $region89: #{tpu_custom_call.1} parent=1 // pred_fallthru
      _
    // Predicated region
    $region90: #{tpu_custom_call.1} parent=1 // pred_check
      _
    $region91: #{tpu_custom_call.1} parent=1 // pred_check_branch
      %1381 = sbr.rel (0) target = $region93
    $region92: #{tpu_custom_call.1} parent=1 // pred_region
      %1382 = dma.done [#allocation16], 32
    $region93: #{tpu_custom_call.1} parent=1 // pred_fallthru
      _
    %1383 = vsyncpa [#allocation3], 1
    %1384 = vsyncpa [#allocation6], 1
    %1385 = vsyncpa [#allocation9], 1
    %1386 = vsyncpa [#allocation12], 1
    %1387 = vsyncpa [#allocation4], 1
    %1388 = vsyncpa [#allocation16], 1

</llo_original>
